<compile_context>
chip_gen: v7x
topology: tpu7x:2x2x1
jax: 0.10.0
libtpu: 0.0.40
codegen_flags: <defaults>
</compile_context>

<pallas_src>
import math
import jax
import jax.numpy as jnp
from jax import lax
from jax.experimental import pallas as pl
from jax.experimental.pallas import tpu as pltpu

# --- problem sizes (small, consistent with the module) ---------------------
B, L, D, H, FFN = 2, 8, 32, 4, 64
BL = B * L
DPH = D // H
EPS = 1e-5            # nn.LayerNorm default eps
NEG = -1e20           # masked_fill value in the reference module
LANES = 128

# row offsets of each weight block inside the packed (3*D + FFN, 128) slab
WQKV_R, WO_R, W1_R, W2_R = 0, D, 2 * D, 3 * D


def _layernorm(t, gamma, beta):
    mu = t.mean(axis=-1, keepdims=True)
    var = ((t - mu) ** 2).mean(axis=-1, keepdims=True)   # biased, like nn.LayerNorm
    return (t - mu) * lax.rsqrt(var + EPS) * gamma + beta


# ---------------------------------------------------------------------------
# Kernel
# ---------------------------------------------------------------------------
def encoder_layer_kernel(
    x_ref,    # (B*L, D)        activations
    mp_ref,   # (B*L, B*L + 1)  [additive attention bias | output column mask]
    w_ref,    # (3*D + FFN, 128) packed [wqkv*; wo; w1; w2], zero-padded lanes
    p_ref,    # (8, 128)        packed [bqkv*; bo; b1; b2; g1; beta1; g2; beta2]
    o_ref,    # (B*L, D)
):
    x = x_ref[...]                               # (BL, D)
    mp = mp_ref[...]                             # (BL, BL+1)
    bias = mp[:, 0:BL]                           # (BL, BL) key-pad + cross-batch bias
    mcol = mp[:, BL:BL + 1]                      # (BL, 1)  output token mask

    # ---- fused QKV projection (scale already folded into the q block) -----
    qkv = jnp.dot(x, w_ref[WQKV_R:WQKV_R + D, :],
                  preferred_element_type=jnp.float32) + p_ref[0:1, :]   # (BL, 128)

    # ---- multi-head attention over the flattened token axis ---------------
    attn = jnp.zeros((BL, LANES), jnp.float32)   # lane-dense accumulator (cols 0:D valid)
    for h in range(H):                           # H = 4, statically unrolled
        c0 = h * DPH
        qh = qkv[:, c0:c0 + DPH]                             # (BL, DPH)
        kh = qkv[:, D + c0:D + c0 + DPH]                     # (BL, DPH)
        vh = qkv[:, 2 * D + c0:2 * D + c0 + DPH]             # (BL, DPH)

        # scores over all B*L keys; cross-batch / padded keys get -1e20
        s = lax.dot_general(qh, kh, (((1,), (1,)), ((), ())),
                            preferred_element_type=jnp.float32)          # (BL, BL)
        s = s + bias
        s = s - s.max(axis=-1, keepdims=True)
        p = jnp.exp(s)
        p = p / p.sum(axis=-1, keepdims=True)     # exact softmax (no approx reciprocal)

        ctx = jnp.dot(p, vh, preferred_element_type=jnp.float32)         # (BL, DPH)
        # accumulate straight into the output projection: 8-aligned sublane
        # ref-slice of the weight slab -> (BL, 128), only cols 0:D nonzero
        attn = attn + jnp.dot(ctx, w_ref[WO_R + c0:WO_R + c0 + DPH, :],
                              preferred_element_type=jnp.float32)

    attn = attn + p_ref[1:2, :]                   # + bo (zero-padded row)

    g1, beta1 = p_ref[4:5, 0:D], p_ref[5:6, 0:D]
    g2, beta2 = p_ref[6:7, 0:D], p_ref[7:8, 0:D]

    # ---- residual + LayerNorm 1 -------------------------------------------
    t = _layernorm(x + attn[:, 0:D], g1, beta1)                           # (BL, D)

    # ---- FFN: relu(t W1 + b1) W2 + b2 ---------------------------------------
    h1 = jnp.maximum(
        jnp.dot(t, w_ref[W1_R:W1_R + D, :],
                preferred_element_type=jnp.float32) + p_ref[2:3, :], 0.0)  # (BL, 128)
    ff = jnp.dot(h1[:, 0:FFN], w_ref[W2_R:W2_R + FFN, :],
                 preferred_element_type=jnp.float32) + p_ref[3:4, :]       # (BL, 128)

    # ---- residual + LayerNorm 2 + final mask multiply ------------------------
    t2 = _layernorm(t + ff[:, 0:D], g2, beta2)
    o_ref[...] = t2 * mcol


# ---------------------------------------------------------------------------
# Wrapper
# ---------------------------------------------------------------------------
def _pad_lanes(a, width=LANES):
    return jnp.pad(a, ((0, 0), (0, width - a.shape[1])))


def pack_params(params):
    """Pack all parameters into two lane-aligned slabs (done once)."""
    inv_scale = 1.0 / math.sqrt(DPH)
    # fold 1/sqrt(dim_per_head) into the q projection (weight and bias)
    wqkv = jnp.concatenate(
        [params["wq"] * inv_scale, params["wk"], params["wv"]], axis=1)   # (D, 3D)
    bqkv = jnp.concatenate(
        [params["bq"] * inv_scale, params["bk"], params["bv"]], axis=1)   # (1, 3D)

    w_slab = jnp.concatenate([
        _pad_lanes(wqkv),           # rows   0:32
        _pad_lanes(params["wo"]),   # rows  32:64
        _pad_lanes(params["w1"]),   # rows  64:96
        _pad_lanes(params["w2"]),   # rows  96:160
    ], axis=0)                      # (160, 128)

    p_slab = jnp.concatenate([
        _pad_lanes(bqkv), _pad_lanes(params["bo"]),
        _pad_lanes(params["b1"]), _pad_lanes(params["b2"]),
        _pad_lanes(params["g1"]), _pad_lanes(params["beta1"]),
        _pad_lanes(params["g2"]), _pad_lanes(params["beta2"]),
    ], axis=0)                      # (8, 128)
    return w_slab, p_slab


def transformer_encoder_layer(x, mask, packed):
    """x: (B, L, D) f32, mask: (B, L) f32 of {0,1}; packed = pack_params(...)."""
    w_slab, p_slab = packed
    x2 = x.reshape(BL, D)
    mask_f = mask.astype(jnp.float32)

    # single mask input: additive attention bias over the flattened token axis
    # (0 where same batch AND key valid, else -1e20) + output column mask.
    bids = jnp.repeat(jnp.arange(B), L)                                  # (BL,)
    valid = mask_f.reshape(BL)
    same = bids[:, None] == bids[None, :]
    bias2d = jnp.where(same & (valid[None, :] > 0.0), 0.0, NEG).astype(jnp.float32)
    maskpack = jnp.concatenate([bias2d, valid.reshape(BL, 1)], axis=1)   # (BL, BL+1)

    out = pl.pallas_call(
        encoder_layer_kernel,
        out_shape=jax.ShapeDtypeStruct((BL, D), jnp.float32),
        in_specs=[
            pl.BlockSpec(memory_space=pltpu.MemorySpace.VMEM),   # x
            pl.BlockSpec(memory_space=pltpu.MemorySpace.VMEM),   # maskpack
            pl.BlockSpec(memory_space=pltpu.MemorySpace.VMEM),   # weight slab
            pl.BlockSpec(memory_space=pltpu.MemorySpace.VMEM),   # bias/LN slab
        ],
        out_specs=pl.BlockSpec(memory_space=pltpu.MemorySpace.VMEM),
    )(x2, maskpack, w_slab, p_slab)

    return out.reshape(B, L, D)


# ---------------------- deterministic parameter init -----------------------
def init_params(key):
    ks = jax.random.split(key, 12)

    def xavier_normal(k, shape):
        std = math.sqrt(2.0 / (shape[0] + shape[1]))
        return std * jax.random.normal(k, shape, jnp.float32)

    def xavier_uniform(k, shape):
        a = math.sqrt(6.0 / (shape[0] + shape[1]))
        return jax.random.uniform(k, shape, jnp.float32, -a, a)

    def bias(k, n, fan_in):
        bound = 1.0 / math.sqrt(fan_in)
        return jax.random.uniform(k, (1, n), jnp.float32, -bound, bound)

    return {
        # attention weights stored as (in, out) so activations do x @ W
        "wq": xavier_normal(ks[0], (D, D)), "bq": bias(ks[1], D, D),
        "wk": xavier_normal(ks[2], (D, D)), "bk": bias(ks[3], D, D),
        "wv": xavier_normal(ks[4], (D, D)), "bv": bias(ks[5], D, D),
        "wo": xavier_normal(ks[6], (D, D)), "bo": bias(ks[7], D, D),
        # layer norms
        "g1": jnp.ones((1, D), jnp.float32), "beta1": jnp.zeros((1, D), jnp.float32),
        "g2": jnp.ones((1, D), jnp.float32), "beta2": jnp.zeros((1, D), jnp.float32),
        # FFN
        "w1": xavier_uniform(ks[8], (D, FFN)), "b1": bias(ks[9], FFN, D),
        "w2": xavier_uniform(ks[10], (FFN, D)), "b2": bias(ks[11], D, FFN),
    }


# ---------------------- pure-JAX reference (for sanity) ---------------------
def reference(x, mask, p):
    # Matches the PyTorch module: masked_fill(-1e20) THEN divide by sqrt(dph).
    scale = math.sqrt(DPH)
    q = x @ p["wq"] + p["bq"]
    k = x @ p["wk"] + p["bk"]
    v = x @ p["wv"] + p["bv"]

    def heads(t):
        return t.reshape(B, L, H, DPH).transpose(0, 2, 1, 3)

    qh, kh, vh = heads(q), heads(k), heads(v)
    scores = jnp.einsum("bhqd,bhkd->bhqk", qh, kh)
    key_invalid = (mask == 0.0).reshape(B, 1, 1, L)
    scores = jnp.where(key_invalid, NEG, scores) / scale
    w = jax.nn.softmax(scores, axis=-1)
    ctx = jnp.einsum("bhqk,bhkd->bhqd", w, vh).transpose(0, 2, 1, 3).reshape(B, L, D)
    attn = ctx @ p["wo"] + p["bo"]

    t = _layernorm(x + attn, p["g1"], p["beta1"])
    h1 = jax.nn.relu(t @ p["w1"] + p["b1"])
    ff = h1 @ p["w2"] + p["b2"]
    t2 = _layernorm(t + ff, p["g2"], p["beta2"])
    return t2 * mask[..., None]


if __name__ == "__main__":
    key = jax.random.PRNGKey(0)
    kx, kp = jax.random.split(key)

    x = jax.random.normal(kx, (B, L, D), jnp.float32)
    mask = jnp.ones((B, L), jnp.float32).at[1, 5:].set(0.0)  # pad tail of batch 1
    params = init_params(kp)
    packed = pack_params(params)                              # one-time packing

    out = transformer_encoder_layer(x, mask, packed)
    out = jax.block_until_ready(out)

    ref = reference(x, mask, params)
    assert out.shape == (B, L, D)
    assert jnp.allclose(out, ref, rtol=1e-3, atol=1e-3), "mismatch vs JAX reference"

    print("KERNEL_OK")
</pallas_src>

<mosaic_0001>
module attributes {stable_mosaic.version = 11 : i64} {
  func.func @encoder_layer_kernel(%arg0: memref<16x32xf32, #tpu.memory_space<vmem>>, %arg1: memref<16x17xf32, #tpu.memory_space<vmem>>, %arg2: memref<160x128xf32, #tpu.memory_space<vmem>>, %arg3: memref<8x128xf32, #tpu.memory_space<vmem>>, %arg4: memref<16x32xf32, #tpu.memory_space<vmem>>) attributes {dimension_semantics = [], scalar_prefetch = 0 : i64, scratch_operands = 0 : i64, tpu.core_type = #tpu.core_type<tc>} {
    %c0 = arith.constant 0 : index
    %c0_0 = arith.constant 0 : index
    %0 = vector.load %arg0[%c0, %c0_0] : memref<16x32xf32, #tpu.memory_space<vmem>>, vector<16x32xf32>
    %c0_1 = arith.constant 0 : index
    %c0_2 = arith.constant 0 : index
    %1 = vector.load %arg1[%c0_1, %c0_2] : memref<16x17xf32, #tpu.memory_space<vmem>>, vector<16x17xf32>
    %2 = vector.extract_strided_slice %1 {offsets = [0, 0], sizes = [16, 16], strides = [1, 1]} : vector<16x17xf32> to vector<16x16xf32>
    %3 = vector.extract_strided_slice %1 {offsets = [0, 16], sizes = [16, 1], strides = [1, 1]} : vector<16x17xf32> to vector<16x1xf32>
    %c0_3 = arith.constant 0 : index
    %c0_4 = arith.constant 0 : index
    %4 = vector.load %arg2[%c0_3, %c0_4] : memref<160x128xf32, #tpu.memory_space<vmem>>, vector<32x128xf32>
    %cst = arith.constant dense<0.000000e+00> : vector<16x128xf32>
    %5 = tpu.matmul %0, %4, %cst {dimension_numbers = #tpu.dot_dimension_numbers<[1], [0], [0], [1], [0, 0, 1, 1], [], []>} : vector<16x32xf32>, vector<32x128xf32>, vector<16x128xf32> -> vector<16x128xf32>
    %c0_5 = arith.constant 0 : index
    %c0_6 = arith.constant 0 : index
    %6 = vector.load %arg3[%c0_5, %c0_6] : memref<8x128xf32, #tpu.memory_space<vmem>>, vector<1x128xf32>
    %7 = vector.broadcast %6 : vector<1x128xf32> to vector<16x128xf32>
    %8 = arith.addf %5, %7 : vector<16x128xf32>
    %cst_7 = arith.constant 0.000000e+00 : f32
    %9 = vector.broadcast %cst_7 : f32 to vector<16x128xf32>
    %10 = vector.extract_strided_slice %8 {offsets = [0, 0], sizes = [16, 8], strides = [1, 1]} : vector<16x128xf32> to vector<16x8xf32>
    %11 = vector.extract_strided_slice %8 {offsets = [0, 32], sizes = [16, 8], strides = [1, 1]} : vector<16x128xf32> to vector<16x8xf32>
    %12 = vector.extract_strided_slice %8 {offsets = [0, 64], sizes = [16, 8], strides = [1, 1]} : vector<16x128xf32> to vector<16x8xf32>
    %cst_8 = arith.constant dense<0.000000e+00> : vector<16x16xf32>
    %13 = tpu.matmul %10, %11, %cst_8 {dimension_numbers = #tpu.dot_dimension_numbers<[1], [1], [0], [0], [0, 0, 1, 0], [], []>} : vector<16x8xf32>, vector<16x8xf32>, vector<16x16xf32> -> vector<16x16xf32>
    %14 = arith.addf %13, %2 : vector<16x16xf32>
    %cst_9 = arith.constant dense<0xFF800000> : vector<16xf32>
    %15 = vector.multi_reduction <maximumf>, %14, %cst_9 [1] : vector<16x16xf32> to vector<16xf32>
    %16 = vector.shape_cast %15 : vector<16xf32> to vector<16x1xf32>
    %17 = vector.broadcast %16 : vector<16x1xf32> to vector<16x16xf32>
    %18 = arith.subf %14, %17 : vector<16x16xf32>
    %19 = math.exp %18 : vector<16x16xf32>
    %cst_10 = arith.constant dense<0.000000e+00> : vector<16xf32>
    %20 = vector.multi_reduction <add>, %19, %cst_10 [1] : vector<16x16xf32> to vector<16xf32>
    %21 = vector.shape_cast %20 : vector<16xf32> to vector<16x1xf32>
    %22 = vector.broadcast %21 : vector<16x1xf32> to vector<16x16xf32>
    %23 = arith.divf %19, %22 : vector<16x16xf32>
    %cst_11 = arith.constant dense<0.000000e+00> : vector<16x8xf32>
    %24 = tpu.matmul %23, %12, %cst_11 {dimension_numbers = #tpu.dot_dimension_numbers<[1], [0], [0], [1], [0, 0, 1, 1], [], []>} : vector<16x16xf32>, vector<16x8xf32>, vector<16x8xf32> -> vector<16x8xf32>
    %c32 = arith.constant 32 : index
    %c0_12 = arith.constant 0 : index
    %25 = vector.load %arg2[%c32, %c0_12] : memref<160x128xf32, #tpu.memory_space<vmem>>, vector<8x128xf32>
    %cst_13 = arith.constant dense<0.000000e+00> : vector<16x128xf32>
    %26 = tpu.matmul %24, %25, %cst_13 {dimension_numbers = #tpu.dot_dimension_numbers<[1], [0], [0], [1], [0, 0, 1, 1], [], []>} : vector<16x8xf32>, vector<8x128xf32>, vector<16x128xf32> -> vector<16x128xf32>
    %27 = arith.addf %9, %26 : vector<16x128xf32>
    %28 = vector.extract_strided_slice %8 {offsets = [0, 8], sizes = [16, 8], strides = [1, 1]} : vector<16x128xf32> to vector<16x8xf32>
    %29 = vector.extract_strided_slice %8 {offsets = [0, 40], sizes = [16, 8], strides = [1, 1]} : vector<16x128xf32> to vector<16x8xf32>
    %30 = vector.extract_strided_slice %8 {offsets = [0, 72], sizes = [16, 8], strides = [1, 1]} : vector<16x128xf32> to vector<16x8xf32>
    %cst_14 = arith.constant dense<0.000000e+00> : vector<16x16xf32>
    %31 = tpu.matmul %28, %29, %cst_14 {dimension_numbers = #tpu.dot_dimension_numbers<[1], [1], [0], [0], [0, 0, 1, 0], [], []>} : vector<16x8xf32>, vector<16x8xf32>, vector<16x16xf32> -> vector<16x16xf32>
    %32 = arith.addf %31, %2 : vector<16x16xf32>
    %cst_15 = arith.constant dense<0xFF800000> : vector<16xf32>
    %33 = vector.multi_reduction <maximumf>, %32, %cst_15 [1] : vector<16x16xf32> to vector<16xf32>
    %34 = vector.shape_cast %33 : vector<16xf32> to vector<16x1xf32>
    %35 = vector.broadcast %34 : vector<16x1xf32> to vector<16x16xf32>
    %36 = arith.subf %32, %35 : vector<16x16xf32>
    %37 = math.exp %36 : vector<16x16xf32>
    %cst_16 = arith.constant dense<0.000000e+00> : vector<16xf32>
    %38 = vector.multi_reduction <add>, %37, %cst_16 [1] : vector<16x16xf32> to vector<16xf32>
    %39 = vector.shape_cast %38 : vector<16xf32> to vector<16x1xf32>
    %40 = vector.broadcast %39 : vector<16x1xf32> to vector<16x16xf32>
    %41 = arith.divf %37, %40 : vector<16x16xf32>
    %cst_17 = arith.constant dense<0.000000e+00> : vector<16x8xf32>
    %42 = tpu.matmul %41, %30, %cst_17 {dimension_numbers = #tpu.dot_dimension_numbers<[1], [0], [0], [1], [0, 0, 1, 1], [], []>} : vector<16x16xf32>, vector<16x8xf32>, vector<16x8xf32> -> vector<16x8xf32>
    %c40 = arith.constant 40 : index
    %c0_18 = arith.constant 0 : index
    %43 = vector.load %arg2[%c40, %c0_18] : memref<160x128xf32, #tpu.memory_space<vmem>>, vector<8x128xf32>
    %cst_19 = arith.constant dense<0.000000e+00> : vector<16x128xf32>
    %44 = tpu.matmul %42, %43, %cst_19 {dimension_numbers = #tpu.dot_dimension_numbers<[1], [0], [0], [1], [0, 0, 1, 1], [], []>} : vector<16x8xf32>, vector<8x128xf32>, vector<16x128xf32> -> vector<16x128xf32>
    %45 = arith.addf %27, %44 : vector<16x128xf32>
    %46 = vector.extract_strided_slice %8 {offsets = [0, 16], sizes = [16, 8], strides = [1, 1]} : vector<16x128xf32> to vector<16x8xf32>
    %47 = vector.extract_strided_slice %8 {offsets = [0, 48], sizes = [16, 8], strides = [1, 1]} : vector<16x128xf32> to vector<16x8xf32>
    %48 = vector.extract_strided_slice %8 {offsets = [0, 80], sizes = [16, 8], strides = [1, 1]} : vector<16x128xf32> to vector<16x8xf32>
    %cst_20 = arith.constant dense<0.000000e+00> : vector<16x16xf32>
    %49 = tpu.matmul %46, %47, %cst_20 {dimension_numbers = #tpu.dot_dimension_numbers<[1], [1], [0], [0], [0, 0, 1, 0], [], []>} : vector<16x8xf32>, vector<16x8xf32>, vector<16x16xf32> -> vector<16x16xf32>
    %50 = arith.addf %49, %2 : vector<16x16xf32>
    %cst_21 = arith.constant dense<0xFF800000> : vector<16xf32>
    %51 = vector.multi_reduction <maximumf>, %50, %cst_21 [1] : vector<16x16xf32> to vector<16xf32>
    %52 = vector.shape_cast %51 : vector<16xf32> to vector<16x1xf32>
    %53 = vector.broadcast %52 : vector<16x1xf32> to vector<16x16xf32>
    %54 = arith.subf %50, %53 : vector<16x16xf32>
    %55 = math.exp %54 : vector<16x16xf32>
    %cst_22 = arith.constant dense<0.000000e+00> : vector<16xf32>
    %56 = vector.multi_reduction <add>, %55, %cst_22 [1] : vector<16x16xf32> to vector<16xf32>
    %57 = vector.shape_cast %56 : vector<16xf32> to vector<16x1xf32>
    %58 = vector.broadcast %57 : vector<16x1xf32> to vector<16x16xf32>
    %59 = arith.divf %55, %58 : vector<16x16xf32>
    %cst_23 = arith.constant dense<0.000000e+00> : vector<16x8xf32>
    %60 = tpu.matmul %59, %48, %cst_23 {dimension_numbers = #tpu.dot_dimension_numbers<[1], [0], [0], [1], [0, 0, 1, 1], [], []>} : vector<16x16xf32>, vector<16x8xf32>, vector<16x8xf32> -> vector<16x8xf32>
    %c48 = arith.constant 48 : index
    %c0_24 = arith.constant 0 : index
    %61 = vector.load %arg2[%c48, %c0_24] : memref<160x128xf32, #tpu.memory_space<vmem>>, vector<8x128xf32>
    %cst_25 = arith.constant dense<0.000000e+00> : vector<16x128xf32>
    %62 = tpu.matmul %60, %61, %cst_25 {dimension_numbers = #tpu.dot_dimension_numbers<[1], [0], [0], [1], [0, 0, 1, 1], [], []>} : vector<16x8xf32>, vector<8x128xf32>, vector<16x128xf32> -> vector<16x128xf32>
    %63 = arith.addf %45, %62 : vector<16x128xf32>
    %64 = vector.extract_strided_slice %8 {offsets = [0, 24], sizes = [16, 8], strides = [1, 1]} : vector<16x128xf32> to vector<16x8xf32>
    %65 = vector.extract_strided_slice %8 {offsets = [0, 56], sizes = [16, 8], strides = [1, 1]} : vector<16x128xf32> to vector<16x8xf32>
    %66 = vector.extract_strided_slice %8 {offsets = [0, 88], sizes = [16, 8], strides = [1, 1]} : vector<16x128xf32> to vector<16x8xf32>
    %cst_26 = arith.constant dense<0.000000e+00> : vector<16x16xf32>
    %67 = tpu.matmul %64, %65, %cst_26 {dimension_numbers = #tpu.dot_dimension_numbers<[1], [1], [0], [0], [0, 0, 1, 0], [], []>} : vector<16x8xf32>, vector<16x8xf32>, vector<16x16xf32> -> vector<16x16xf32>
    %68 = arith.addf %67, %2 : vector<16x16xf32>
    %cst_27 = arith.constant dense<0xFF800000> : vector<16xf32>
    %69 = vector.multi_reduction <maximumf>, %68, %cst_27 [1] : vector<16x16xf32> to vector<16xf32>
    %70 = vector.shape_cast %69 : vector<16xf32> to vector<16x1xf32>
    %71 = vector.broadcast %70 : vector<16x1xf32> to vector<16x16xf32>
    %72 = arith.subf %68, %71 : vector<16x16xf32>
    %73 = math.exp %72 : vector<16x16xf32>
    %cst_28 = arith.constant dense<0.000000e+00> : vector<16xf32>
    %74 = vector.multi_reduction <add>, %73, %cst_28 [1] : vector<16x16xf32> to vector<16xf32>
    %75 = vector.shape_cast %74 : vector<16xf32> to vector<16x1xf32>
    %76 = vector.broadcast %75 : vector<16x1xf32> to vector<16x16xf32>
    %77 = arith.divf %73, %76 : vector<16x16xf32>
    %cst_29 = arith.constant dense<0.000000e+00> : vector<16x8xf32>
    %78 = tpu.matmul %77, %66, %cst_29 {dimension_numbers = #tpu.dot_dimension_numbers<[1], [0], [0], [1], [0, 0, 1, 1], [], []>} : vector<16x16xf32>, vector<16x8xf32>, vector<16x8xf32> -> vector<16x8xf32>
    %c56 = arith.constant 56 : index
    %c0_30 = arith.constant 0 : index
    %79 = vector.load %arg2[%c56, %c0_30] : memref<160x128xf32, #tpu.memory_space<vmem>>, vector<8x128xf32>
    %cst_31 = arith.constant dense<0.000000e+00> : vector<16x128xf32>
    %80 = tpu.matmul %78, %79, %cst_31 {dimension_numbers = #tpu.dot_dimension_numbers<[1], [0], [0], [1], [0, 0, 1, 1], [], []>} : vector<16x8xf32>, vector<8x128xf32>, vector<16x128xf32> -> vector<16x128xf32>
    %81 = arith.addf %63, %80 : vector<16x128xf32>
    %c1 = arith.constant 1 : index
    %c0_32 = arith.constant 0 : index
    %82 = vector.load %arg3[%c1, %c0_32] : memref<8x128xf32, #tpu.memory_space<vmem>>, vector<1x128xf32>
    %83 = vector.broadcast %82 : vector<1x128xf32> to vector<16x128xf32>
    %84 = arith.addf %81, %83 : vector<16x128xf32>
    %c4 = arith.constant 4 : index
    %c0_33 = arith.constant 0 : index
    %85 = vector.load %arg3[%c4, %c0_33] : memref<8x128xf32, #tpu.memory_space<vmem>>, vector<1x32xf32>
    %c5 = arith.constant 5 : index
    %c0_34 = arith.constant 0 : index
    %86 = vector.load %arg3[%c5, %c0_34] : memref<8x128xf32, #tpu.memory_space<vmem>>, vector<1x32xf32>
    %c6 = arith.constant 6 : index
    %c0_35 = arith.constant 0 : index
    %87 = vector.load %arg3[%c6, %c0_35] : memref<8x128xf32, #tpu.memory_space<vmem>>, vector<1x32xf32>
    %c7 = arith.constant 7 : index
    %c0_36 = arith.constant 0 : index
    %88 = vector.load %arg3[%c7, %c0_36] : memref<8x128xf32, #tpu.memory_space<vmem>>, vector<1x32xf32>
    %89 = vector.extract_strided_slice %84 {offsets = [0, 0], sizes = [16, 32], strides = [1, 1]} : vector<16x128xf32> to vector<16x32xf32>
    %90 = arith.addf %0, %89 : vector<16x32xf32>
    %cst_37 = arith.constant dense<0.000000e+00> : vector<16xf32>
    %91 = vector.multi_reduction <add>, %90, %cst_37 [1] : vector<16x32xf32> to vector<16xf32>
    %92 = vector.shape_cast %91 : vector<16xf32> to vector<16x1xf32>
    %cst_38 = arith.constant 3.200000e+01 : f32
    %93 = vector.broadcast %cst_38 : f32 to vector<16x1xf32>
    %94 = arith.divf %92, %93 : vector<16x1xf32>
    %95 = vector.broadcast %94 : vector<16x1xf32> to vector<16x32xf32>
    %96 = arith.subf %90, %95 : vector<16x32xf32>
    %97 = arith.mulf %96, %96 : vector<16x32xf32>
    %cst_39 = arith.constant dense<0.000000e+00> : vector<16xf32>
    %98 = vector.multi_reduction <add>, %97, %cst_39 [1] : vector<16x32xf32> to vector<16xf32>
    %99 = vector.shape_cast %98 : vector<16xf32> to vector<16x1xf32>
    %cst_40 = arith.constant 3.200000e+01 : f32
    %100 = vector.broadcast %cst_40 : f32 to vector<16x1xf32>
    %101 = arith.divf %99, %100 : vector<16x1xf32>
    %102 = vector.broadcast %94 : vector<16x1xf32> to vector<16x32xf32>
    %103 = arith.subf %90, %102 : vector<16x32xf32>
    %cst_41 = arith.constant 9.99999974E-6 : f32
    %104 = vector.broadcast %cst_41 : f32 to vector<16x1xf32>
    %105 = arith.addf %101, %104 : vector<16x1xf32>
    %106 = math.rsqrt %105 : vector<16x1xf32>
    %107 = vector.broadcast %106 : vector<16x1xf32> to vector<16x32xf32>
    %108 = arith.mulf %103, %107 : vector<16x32xf32>
    %109 = vector.broadcast %85 : vector<1x32xf32> to vector<16x32xf32>
    %110 = arith.mulf %108, %109 : vector<16x32xf32>
    %111 = vector.broadcast %86 : vector<1x32xf32> to vector<16x32xf32>
    %112 = arith.addf %110, %111 : vector<16x32xf32>
    %c64 = arith.constant 64 : index
    %c0_42 = arith.constant 0 : index
    %113 = vector.load %arg2[%c64, %c0_42] : memref<160x128xf32, #tpu.memory_space<vmem>>, vector<32x128xf32>
    %cst_43 = arith.constant dense<0.000000e+00> : vector<16x128xf32>
    %114 = tpu.matmul %112, %113, %cst_43 {dimension_numbers = #tpu.dot_dimension_numbers<[1], [0], [0], [1], [0, 0, 1, 1], [], []>} : vector<16x32xf32>, vector<32x128xf32>, vector<16x128xf32> -> vector<16x128xf32>
    %c2 = arith.constant 2 : index
    %c0_44 = arith.constant 0 : index
    %115 = vector.load %arg3[%c2, %c0_44] : memref<8x128xf32, #tpu.memory_space<vmem>>, vector<1x128xf32>
    %116 = vector.broadcast %115 : vector<1x128xf32> to vector<16x128xf32>
    %117 = arith.addf %114, %116 : vector<16x128xf32>
    %cst_45 = arith.constant 0.000000e+00 : f32
    %118 = vector.broadcast %cst_45 : f32 to vector<16x128xf32>
    %119 = arith.maximumf %117, %118 : vector<16x128xf32>
    %120 = vector.extract_strided_slice %119 {offsets = [0, 0], sizes = [16, 64], strides = [1, 1]} : vector<16x128xf32> to vector<16x64xf32>
    %c96 = arith.constant 96 : index
    %c0_46 = arith.constant 0 : index
    %121 = vector.load %arg2[%c96, %c0_46] : memref<160x128xf32, #tpu.memory_space<vmem>>, vector<64x128xf32>
    %cst_47 = arith.constant dense<0.000000e+00> : vector<16x128xf32>
    %122 = tpu.matmul %120, %121, %cst_47 {dimension_numbers = #tpu.dot_dimension_numbers<[1], [0], [0], [1], [0, 0, 1, 1], [], []>} : vector<16x64xf32>, vector<64x128xf32>, vector<16x128xf32> -> vector<16x128xf32>
    %c3 = arith.constant 3 : index
    %c0_48 = arith.constant 0 : index
    %123 = vector.load %arg3[%c3, %c0_48] : memref<8x128xf32, #tpu.memory_space<vmem>>, vector<1x128xf32>
    %124 = vector.broadcast %123 : vector<1x128xf32> to vector<16x128xf32>
    %125 = arith.addf %122, %124 : vector<16x128xf32>
    %126 = vector.extract_strided_slice %125 {offsets = [0, 0], sizes = [16, 32], strides = [1, 1]} : vector<16x128xf32> to vector<16x32xf32>
    %127 = arith.addf %112, %126 : vector<16x32xf32>
    %cst_49 = arith.constant dense<0.000000e+00> : vector<16xf32>
    %128 = vector.multi_reduction <add>, %127, %cst_49 [1] : vector<16x32xf32> to vector<16xf32>
    %129 = vector.shape_cast %128 : vector<16xf32> to vector<16x1xf32>
    %cst_50 = arith.constant 3.200000e+01 : f32
    %130 = vector.broadcast %cst_50 : f32 to vector<16x1xf32>
    %131 = arith.divf %129, %130 : vector<16x1xf32>
    %132 = vector.broadcast %131 : vector<16x1xf32> to vector<16x32xf32>
    %133 = arith.subf %127, %132 : vector<16x32xf32>
    %134 = arith.mulf %133, %133 : vector<16x32xf32>
    %cst_51 = arith.constant dense<0.000000e+00> : vector<16xf32>
    %135 = vector.multi_reduction <add>, %134, %cst_51 [1] : vector<16x32xf32> to vector<16xf32>
    %136 = vector.shape_cast %135 : vector<16xf32> to vector<16x1xf32>
    %cst_52 = arith.constant 3.200000e+01 : f32
    %137 = vector.broadcast %cst_52 : f32 to vector<16x1xf32>
    %138 = arith.divf %136, %137 : vector<16x1xf32>
    %139 = vector.broadcast %131 : vector<16x1xf32> to vector<16x32xf32>
    %140 = arith.subf %127, %139 : vector<16x32xf32>
    %cst_53 = arith.constant 9.99999974E-6 : f32
    %141 = vector.broadcast %cst_53 : f32 to vector<16x1xf32>
    %142 = arith.addf %138, %141 : vector<16x1xf32>
    %143 = math.rsqrt %142 : vector<16x1xf32>
    %144 = vector.broadcast %143 : vector<16x1xf32> to vector<16x32xf32>
    %145 = arith.mulf %140, %144 : vector<16x32xf32>
    %146 = vector.broadcast %87 : vector<1x32xf32> to vector<16x32xf32>
    %147 = arith.mulf %145, %146 : vector<16x32xf32>
    %148 = vector.broadcast %88 : vector<1x32xf32> to vector<16x32xf32>
    %149 = arith.addf %147, %148 : vector<16x32xf32>
    %150 = vector.broadcast %3 : vector<16x1xf32> to vector<16x32xf32>
    %151 = arith.mulf %149, %150 : vector<16x32xf32>
    %c0_54 = arith.constant 0 : index
    %c0_55 = arith.constant 0 : index
    %152 = vector.load %arg4[%c0_54, %c0_55] : memref<16x32xf32, #tpu.memory_space<vmem>>, vector<16x32xf32>
    tpu.vector_store %arg4[%c0_54, %c0_55], %151 {strides = array<i32>} : memref<16x32xf32, #tpu.memory_space<vmem>>, vector<16x32xf32>,
    return
  }
}

</mosaic_0001>

<llo_original>
// kernel: tpu_custom_call.1
$region0: #{tpu_custom_call.1}
  #allocation0 [shape = 'u32[]', space=smem, size = 0x4, offset = 0x4, fixed_abs, tag = 'smem constant byte address 0x4 - core index']
  #allocation1 [shape = 'u32[144,128]{1,0:T(1,128)}', space=vmem, size = 0x12000, scoped, tag = 'internal scratch']
  %s0 = inlined_call_operand.hbm [shape: f32[16,32], index: 0, kind: input, shape index: {}]
  %s1 = inlined_call_operand.hbm [shape: f32[16,17], index: 1, kind: input, shape index: {}]
  %s2 = inlined_call_operand.hbm [shape: f32[160,128], index: 2, kind: input, shape index: {}]
  %s3 = inlined_call_operand.vmem [shape: f32[8,128], index: 3, kind: input, shape index: {}]
  %s4 = inlined_call_operand.hbm [shape: f32[16,32], index: 4, kind: output, shape index: {}]
  %s5 = sld [smem:[#allocation0]]
  $region38: #{tpu_custom_call.1} parent=0
    _
  %s7 = ssub.s32 1, %s5
  %s8 = scalar_select 0, %s7, %s5
  $region1: #{tpu_custom_call.1} parent=0
    #allocation2 [shape = 'u8[8192]{0}', space=vmem, size = 0x2000, scoped, tag = 'input window, operand 0, single buffered']
    #allocation3 [shape = 's32[1]{0}', space=sflag, size = 0x4, scoped, tag = 'scoped memory for tpu_custom_call.1']
    #allocation4 [shape = 's32[1]{0}', space=sflag, size = 0x4, scoped, tag = 'scoped memory for tpu_custom_call.1']
    #allocation5 [shape = 'u8[8192]{0}', space=vmem, size = 0x2000, scoped, tag = 'input window, operand 1, single buffered']
    #allocation6 [shape = 's32[1]{0}', space=sflag, size = 0x4, scoped, tag = 'scoped memory for tpu_custom_call.1']
    #allocation7 [shape = 'u8[81920]{0}', space=vmem, size = 0x14000, scoped, tag = 'input window, operand 2, single buffered']
    #allocation8 [shape = 'u8[8192]{0}', space=vmem, size = 0x2000, scoped, tag = 'output window, operand 0, single buffered']
    %9 = vsyncpa [#allocation3], 0
    %10 = vsyncpa [#allocation6], 0
    %11 = vsyncpa [#allocation4], 0
    // Predicated region
    $region2: #{tpu_custom_call.1} parent=1 // pred_check
      _
    $region3: #{tpu_custom_call.1} parent=1 // pred_check_branch
      %13 = sbr.rel (0) target = $region5
    $region4: #{tpu_custom_call.1} parent=1 // pred_region
      %s15 = ssub.s32 256, 256
      %16 = vsyncadd [#allocation3], %s15
      %s17 = sshll.u32 [#allocation2], 4
      %s18 = int_to_ptr.vmem [resolvable:$true] %s17
      %23 = dma.hbm_to_vmem [thread:$0]  %s0, 256, %s18, [#allocation3], 128, 128, 8
    $region5: #{tpu_custom_call.1} parent=1 // pred_fallthru
      _
    // Predicated region
    $region6: #{tpu_custom_call.1} parent=1 // pred_check
      _
    $region7: #{tpu_custom_call.1} parent=1 // pred_check_branch
      %25 = sbr.rel (0) target = $region9
    $region8: #{tpu_custom_call.1} parent=1 // pred_region
      %s27 = ssub.s32 256, 256
      %28 = vsyncadd [#allocation6], %s27
      %s29 = sshll.u32 [#allocation5], 4
      %s30 = int_to_ptr.vmem [resolvable:$true] %s29
      %35 = dma.hbm_to_vmem [thread:$0]  %s1, 256, %s30, [#allocation6], 128, 128, 8
    $region9: #{tpu_custom_call.1} parent=1 // pred_fallthru
      _
    // Predicated region
    $region10: #{tpu_custom_call.1} parent=1 // pred_check
      _
    $region11: #{tpu_custom_call.1} parent=1 // pred_check_branch
      %37 = sbr.rel (0) target = $region13
    $region12: #{tpu_custom_call.1} parent=1 // pred_region
      %s39 = ssub.s32 2560, 2560
      %40 = vsyncadd [#allocation6], %s39
      %s41 = sshll.u32 [#allocation7], 4
      %s42 = int_to_ptr.vmem [resolvable:$true] %s41
      %47 = dma.hbm_to_vmem [thread:$0]  %s2, 2560, %s42, [#allocation6], 128, 128, 8
    $region13: #{tpu_custom_call.1} parent=1 // pred_fallthru
      _
    // Predicated region
    $region14: #{tpu_custom_call.1} parent=1 // pred_check
      _
    $region15: #{tpu_custom_call.1} parent=1 // pred_check_branch
      %49 = sbr.rel (0) target = $region17
    $region16: #{tpu_custom_call.1} parent=1 // pred_region
      _
    $region17: #{tpu_custom_call.1} parent=1 // pred_fallthru
      _
    // Predicated region
    $region18: #{tpu_custom_call.1} parent=1 // pred_check
      _
    $region19: #{tpu_custom_call.1} parent=1 // pred_check_branch
      %51 = sbr.rel (0) target = $region21
    $region20: #{tpu_custom_call.1} parent=1 // pred_region
      %52 = dma.done [#allocation3], 256
    $region21: #{tpu_custom_call.1} parent=1 // pred_fallthru
      _
    // Predicated region
    $region22: #{tpu_custom_call.1} parent=1 // pred_check
      _
    $region23: #{tpu_custom_call.1} parent=1 // pred_check_branch
      %54 = sbr.rel (0) target = $region25
    $region24: #{tpu_custom_call.1} parent=1 // pred_region
      %55 = dma.done [#allocation6], 256
    $region25: #{tpu_custom_call.1} parent=1 // pred_fallthru
      _
    // Predicated region
    $region26: #{tpu_custom_call.1} parent=1 // pred_check
      _
    $region27: #{tpu_custom_call.1} parent=1 // pred_check_branch
      %57 = sbr.rel (0) target = $region29
    $region28: #{tpu_custom_call.1} parent=1 // pred_region
      %58 = dma.done [#allocation6], 2560
    $region29: #{tpu_custom_call.1} parent=1 // pred_fallthru
      _
    %v59 = vld [vmem:[#allocation2] sm:$0xff]
    %v60 = vld [vmem:[#allocation2 + $0x8] sm:$0xff]
    %v61 = vld [vmem:[#allocation5] sm:$0xff]
    %v62 = vld [vmem:[#allocation5 + $0x8] sm:$0xff]
    %v63 = vld [vmem:[#allocation7] sm:$0xff]
    %v64 = vld [vmem:[#allocation7 + $0x8] sm:$0xff]
    %v65 = vld [vmem:[#allocation7 + $0x10] sm:$0xff]
    %v66 = vld [vmem:[#allocation7 + $0x18] sm:$0xff]
    %v67 = vld [vmem:[%s3] sm:$0x1]
    %v68 = vlaneseq
    %v69 = vshrl.u32 %v68, 7
    %v70 = vsub.s32 0, %v69
    %v71 = vrot.slane %v67, %v70
    %vm72 = vcmask 261120
    %v74 = vsel %vm72, %v59, 0
    %v77 = vsel %vm72, %v60, 0
    %79 = vmatprep.subr.mxu0 0.0
    %80 = vmatpush1.msra.mxu0 %v63
    %81 = vmatprep.subr.mxu0 0.0
    %82 = vmatpush1.msra.mxu0 %v64
    %83 = vmatprep.subr.mxu0 0.0
    %84 = vmatpush1.msra.mxu0 %v65
    %85 = vmatprep.subr.mxu0 0.0
    %86 = vmatpush1.msra.mxu0 %v66
    %87 = vmatprep.subr.mxu0 0.0
    %88 = vmatpush1.msra.mxu0 0.0
    %89 = vmatprep.subr.mxu0 0.0
    %90 = vmatpush1.msra.mxu0 0.0
    %91 = vmatprep.subr.mxu0 0.0
    %92 = vmatpush1.msra.mxu0 0.0
    %93 = vmatprep.subr.mxu0 0.0
    %94 = vmatpush1.msra.mxu0 0.0
    %95 = vmatprep.subr.mxu0 0.0
    %96 = vmatpush1.msra.mxu0 0.0
    %97 = vmatprep.subr.mxu0 0.0
    %98 = vmatpush1.msra.mxu0 0.0
    %99 = vmatprep.subr.mxu0 0.0
    %100 = vmatpush1.msra.mxu0 0.0
    %101 = vmatprep.subr.mxu0 0.0
    %102 = vmatpush1.msra.mxu0 0.0
    %103 = vmatprep.subr.mxu0 0.0
    %104 = vmatpush1.msra.mxu0 0.0
    %105 = vmatprep.subr.mxu0 0.0
    %106 = vmatpush1.msra.mxu0 0.0
    %107 = vmatprep.subr.mxu0 0.0
    %108 = vmatpush1.msra.mxu0 0.0
    %109 = vmatprep.subr.mxu0 0.0
    %110 = vmatpush1.msra.mxu0 0.0
    %111 = vmatprep.subr.mxu0 0.0
    %112 = vmatpush1.msra.mxu0 0.0
    %113 = vmatprep.subr.mxu0 0.0
    %114 = vmatpush1.msra.mxu0 0.0
    %115 = vmatprep.subr.mxu0 0.0
    %116 = vmatpush1.msra.mxu0 0.0
    %117 = vmatprep.subr.mxu0 0.0
    %118 = vmatpush1.msra.mxu0 0.0
    %119 = vmatprep.subr.mxu0 0.0
    %120 = vmatpush1.msra.mxu0 0.0
    %121 = vmatprep.subr.mxu0 0.0
    %122 = vmatpush1.msra.mxu0 0.0
    %123 = vmatprep.subr.mxu0 0.0
    %124 = vmatpush1.msra.mxu0 0.0
    %125 = vmatprep.subr.mxu0 0.0
    %126 = vmatpush1.msra.mxu0 0.0
    %127 = vmatprep.subr.mxu0 0.0
    %128 = vmatpush1.msra.mxu0 0.0
    %129 = vmatprep.subr.mxu0 0.0
    %130 = vmatpush1.msra.mxu0 0.0
    %131 = vmatprep.subr.mxu0 0.0
    %132 = vmatpush1.msra.mxu0 0.0
    %133 = vmatprep.subr.mxu0 0.0
    %134 = vmatpush1.msra.mxu0 0.0
    %135 = vmatprep.subr.mxu0 0.0
    %136 = vmatpush1.msra.mxu0 0.0
    %137 = vmatprep.subr.mxu0 0.0
    %138 = vmatpush1.msra.mxu0 0.0
    %139 = vmatprep.subr.mxu0 0.0
    %140 = vmatpush1.msra.mxu0 0.0
    %141 = vmatprep.subr.mxu0 0.0
    %142 = vmatpush1.msra.mxu0 0.0
    %143 = vmatprep.mubr.f32.mxu0 0.0
    %144 = vmatmul.mubr.f32.gmra.mrb[0].mxu0 %v74
    %v145 = vpop.f32.mrb[0].mxu0
    %v146 = vadd.f32 %v71, %v145
    %v147 = vpop.f32.mrb[0].mxu0
    %148 = vmatprep.mubr.f32.mxu0 0.0
    %149 = vmatmul.mubr.f32.gmra.mrb[0].mxu0 %v77
    %v150 = vpop.f32.mrb[0].mxu0
    %v151 = vadd.f32 %v71, %v150
    %v152 = vpop.f32.mrb[0].mxu0
    %153 = vdwg.mxu0
    %156 = vrot.lane.b32.xlu0 %v146, 96
    %v157 = vpop.permute.xlu0 %156
    %158 = vrot.lane.b32.xlu0 %v151, 96
    %v159 = vpop.permute.xlu0 %158
    %vm160 = vcmask 64512
    %v161 = vsel %vm160, %v146, 0
    %v163 = vsel %vm160, %v151, 0
    %v165 = vsel %vm160, %v157, 0
    %v167 = vsel %vm160, %v159, 0
    %169 = vmatprep.subr.mxu0 0.0
    %170 = vmatpush1.xpose.msra.mxu0 %v165
    %171 = vmatprep.subr.mxu0 0.0
    %172 = vmatpush1.xpose.msra.mxu0 %v167
    %173 = vmatprep.subr.mxu0 0.0
    %174 = vmatpush1.xpose.msra.mxu0 0.0
    %175 = vmatprep.subr.mxu0 0.0
    %176 = vmatpush1.xpose.msra.mxu0 0.0
    %177 = vmatprep.subr.mxu0 0.0
    %178 = vmatpush1.xpose.msra.mxu0 0.0
    %179 = vmatprep.subr.mxu0 0.0
    %180 = vmatpush1.xpose.msra.mxu0 0.0
    %181 = vmatprep.subr.mxu0 0.0
    %182 = vmatpush1.xpose.msra.mxu0 0.0
    %183 = vmatprep.subr.mxu0 0.0
    %184 = vmatpush1.xpose.msra.mxu0 0.0
    %185 = vmatprep.subr.mxu0 0.0
    %186 = vmatpush1.xpose.msra.mxu0 0.0
    %187 = vmatprep.subr.mxu0 0.0
    %188 = vmatpush1.xpose.msra.mxu0 0.0
    %189 = vmatprep.subr.mxu0 0.0
    %190 = vmatpush1.xpose.msra.mxu0 0.0
    %191 = vmatprep.subr.mxu0 0.0
    %192 = vmatpush1.xpose.msra.mxu0 0.0
    %193 = vmatprep.subr.mxu0 0.0
    %194 = vmatpush1.xpose.msra.mxu0 0.0
    %195 = vmatprep.subr.mxu0 0.0
    %196 = vmatpush1.xpose.msra.mxu0 0.0
    %197 = vmatprep.subr.mxu0 0.0
    %198 = vmatpush1.xpose.msra.mxu0 0.0
    %199 = vmatprep.subr.mxu0 0.0
    %200 = vmatpush1.xpose.msra.mxu0 0.0
    %201 = vmatprep.subr.mxu0 0.0
    %202 = vmatpush1.xpose.msra.mxu0 0.0
    %203 = vmatprep.subr.mxu0 0.0
    %204 = vmatpush1.xpose.msra.mxu0 0.0
    %205 = vmatprep.subr.mxu0 0.0
    %206 = vmatpush1.xpose.msra.mxu0 0.0
    %207 = vmatprep.subr.mxu0 0.0
    %208 = vmatpush1.xpose.msra.mxu0 0.0
    %209 = vmatprep.subr.mxu0 0.0
    %210 = vmatpush1.xpose.msra.mxu0 0.0
    %211 = vmatprep.subr.mxu0 0.0
    %212 = vmatpush1.xpose.msra.mxu0 0.0
    %213 = vmatprep.subr.mxu0 0.0
    %214 = vmatpush1.xpose.msra.mxu0 0.0
    %215 = vmatprep.subr.mxu0 0.0
    %216 = vmatpush1.xpose.msra.mxu0 0.0
    %217 = vmatprep.subr.mxu0 0.0
    %218 = vmatpush1.xpose.msra.mxu0 0.0
    %219 = vmatprep.subr.mxu0 0.0
    %220 = vmatpush1.xpose.msra.mxu0 0.0
    %221 = vmatprep.subr.mxu0 0.0
    %222 = vmatpush1.xpose.msra.mxu0 0.0
    %223 = vmatprep.subr.mxu0 0.0
    %224 = vmatpush1.xpose.msra.mxu0 0.0
    %225 = vmatprep.subr.mxu0 0.0
    %226 = vmatpush1.xpose.msra.mxu0 0.0
    %227 = vmatprep.subr.mxu0 0.0
    %228 = vmatpush1.xpose.msra.mxu0 0.0
    %229 = vmatprep.subr.mxu0 0.0
    %230 = vmatpush1.xpose.msra.mxu0 0.0
    %231 = vmatprep.subr.mxu0 0.0
    %232 = vmatpush1.xpose.msra.mxu0 0.0
    %233 = vmatprep.mubr.f32.mxu0 0.0
    %234 = vmatmul.mubr.f32.gmra.mrb[0].mxu0 %v161
    %v235 = vpop.f32.mrb[0].mxu0
    %v236 = vadd.f32 %v61, %v235
    %v237 = vpop.f32.mrb[0].mxu0
    %238 = vmatprep.mubr.f32.mxu0 0.0
    %239 = vmatmul.mubr.f32.gmra.mrb[0].mxu0 %v163
    %v240 = vpop.f32.mrb[0].mxu0
    %v241 = vadd.f32 %v62, %v240
    %v242 = vpop.f32.mrb[0].mxu0
    %243 = vdwg.mxu0
    %vm244 = vcmask 130048
    %v245 = vsel %vm244, %v236, -inf
    %246 = vmax.xlane.f32.xlu0 %v245
    %v247 = vpop.xlane.xlu0 %246
    %v248 = vsel %vm244, %v241, -inf
    %249 = vmax.xlane.f32.xlu0 %v248
    %v250 = vpop.xlane.xlu0 %249
    %v251 = vsub.f32 %v236, %v247
    %v252 = vsub.f32 %v241, %v250
    %v253 = vmul.f32 %v251, 1.442695
    %v254 = vpow.pop %v253
    %v255 = vmul.f32 %v252, 1.442695
    %v256 = vpow.pop %v255
    %v257 = vsel %vm244, %v254, 0.0
    %258 = vadd.xlane.f32.xlu0 %v257
    %v259 = vpop.xlane.xlu0 %258
    %v260 = vsel %vm244, %v256, 0.0
    %261 = vadd.xlane.f32.xlu0 %v260
    %v262 = vpop.xlane.xlu0 %261
    %v263 = vrcp.pop %v259
    %v264 = vmul.f32 %v254, %v263
    %v265 = vrcp.pop %v262
    %v266 = vmul.f32 %v256, %v265
    %267 = vrot.lane.b32.xlu0 %v146, 64
    %v268 = vpop.permute.xlu0 %267
    %269 = vrot.lane.b32.xlu0 %v151, 64
    %v270 = vpop.permute.xlu0 %269
    %v274 = vsel %vm244, %v264, 0
    %v277 = vsel %vm244, %v266, 0
    %279 = vmatprep.subr.mxu0 0.0
    %280 = vmatpush1.msra.mxu0 %v268
    %281 = vmatprep.subr.mxu0 0.0
    %282 = vmatpush1.msra.mxu0 %v270
    %283 = vmatprep.subr.mxu0 0.0
    %284 = vmatpush1.msra.mxu0 0.0
    %285 = vmatprep.subr.mxu0 0.0
    %286 = vmatpush1.msra.mxu0 0.0
    %287 = vmatprep.subr.mxu0 0.0
    %288 = vmatpush1.msra.mxu0 0.0
    %289 = vmatprep.subr.mxu0 0.0
    %290 = vmatpush1.msra.mxu0 0.0
    %291 = vmatprep.subr.mxu0 0.0
    %292 = vmatpush1.msra.mxu0 0.0
    %293 = vmatprep.subr.mxu0 0.0
    %294 = vmatpush1.msra.mxu0 0.0
    %295 = vmatprep.subr.mxu0 0.0
    %296 = vmatpush1.msra.mxu0 0.0
    %297 = vmatprep.subr.mxu0 0.0
    %298 = vmatpush1.msra.mxu0 0.0
    %299 = vmatprep.subr.mxu0 0.0
    %300 = vmatpush1.msra.mxu0 0.0
    %301 = vmatprep.subr.mxu0 0.0
    %302 = vmatpush1.msra.mxu0 0.0
    %303 = vmatprep.subr.mxu0 0.0
    %304 = vmatpush1.msra.mxu0 0.0
    %305 = vmatprep.subr.mxu0 0.0
    %306 = vmatpush1.msra.mxu0 0.0
    %307 = vmatprep.subr.mxu0 0.0
    %308 = vmatpush1.msra.mxu0 0.0
    %309 = vmatprep.subr.mxu0 0.0
    %310 = vmatpush1.msra.mxu0 0.0
    %311 = vmatprep.subr.mxu0 0.0
    %312 = vmatpush1.msra.mxu0 0.0
    %313 = vmatprep.subr.mxu0 0.0
    %314 = vmatpush1.msra.mxu0 0.0
    %315 = vmatprep.subr.mxu0 0.0
    %316 = vmatpush1.msra.mxu0 0.0
    %317 = vmatprep.subr.mxu0 0.0
    %318 = vmatpush1.msra.mxu0 0.0
    %319 = vmatprep.subr.mxu0 0.0
    %320 = vmatpush1.msra.mxu0 0.0
    %321 = vmatprep.subr.mxu0 0.0
    %322 = vmatpush1.msra.mxu0 0.0
    %323 = vmatprep.subr.mxu0 0.0
    %324 = vmatpush1.msra.mxu0 0.0
    %325 = vmatprep.subr.mxu0 0.0
    %326 = vmatpush1.msra.mxu0 0.0
    %327 = vmatprep.subr.mxu0 0.0
    %328 = vmatpush1.msra.mxu0 0.0
    %329 = vmatprep.subr.mxu0 0.0
    %330 = vmatpush1.msra.mxu0 0.0
    %331 = vmatprep.subr.mxu0 0.0
    %332 = vmatpush1.msra.mxu0 0.0
    %333 = vmatprep.subr.mxu0 0.0
    %334 = vmatpush1.msra.mxu0 0.0
    %335 = vmatprep.subr.mxu0 0.0
    %336 = vmatpush1.msra.mxu0 0.0
    %337 = vmatprep.subr.mxu0 0.0
    %338 = vmatpush1.msra.mxu0 0.0
    %339 = vmatprep.subr.mxu0 0.0
    %340 = vmatpush1.msra.mxu0 0.0
    %341 = vmatprep.subr.mxu0 0.0
    %342 = vmatpush1.msra.mxu0 0.0
    %343 = vmatprep.mubr.f32.mxu0 0.0
    %344 = vmatmul.mubr.f32.gmra.mrb[0].mxu0 %v274
    %v345 = vpop.f32.mrb[0].mxu0
    %v346 = vadd.f32 0.0, %v345
    %v347 = vpop.f32.mrb[0].mxu0
    %348 = vmatprep.mubr.f32.mxu0 0.0
    %349 = vmatmul.mubr.f32.gmra.mrb[0].mxu0 %v277
    %v350 = vpop.f32.mrb[0].mxu0
    %v351 = vadd.f32 0.0, %v350
    %v352 = vpop.f32.mrb[0].mxu0
    %353 = vdwg.mxu0
    %v354 = vld [vmem:[#allocation7 + $0x20] sm:$0xff]
    %355 = vrot.lane.b32.xlu0 %v146, 120
    %v356 = vpop.permute.xlu0 %355
    %357 = vrot.lane.b32.xlu0 %v151, 120
    %v358 = vpop.permute.xlu0 %357
    %359 = vrot.lane.b32.xlu0 %v146, 88
    %v360 = vpop.permute.xlu0 %359
    %361 = vrot.lane.b32.xlu0 %v151, 88
    %v362 = vpop.permute.xlu0 %361
    %v363 = vsel %vm160, %v356, 0
    %v365 = vsel %vm160, %v358, 0
    %v367 = vsel %vm160, %v360, 0
    %v369 = vsel %vm160, %v362, 0
    %371 = vmatprep.subr.mxu0 0.0
    %372 = vmatpush1.xpose.msra.mxu0 %v367
    %373 = vmatprep.subr.mxu0 0.0
    %374 = vmatpush1.xpose.msra.mxu0 %v369
    %375 = vmatprep.subr.mxu0 0.0
    %376 = vmatpush1.xpose.msra.mxu0 0.0
    %377 = vmatprep.subr.mxu0 0.0
    %378 = vmatpush1.xpose.msra.mxu0 0.0
    %379 = vmatprep.subr.mxu0 0.0
    %380 = vmatpush1.xpose.msra.mxu0 0.0
    %381 = vmatprep.subr.mxu0 0.0
    %382 = vmatpush1.xpose.msra.mxu0 0.0
    %383 = vmatprep.subr.mxu0 0.0
    %384 = vmatpush1.xpose.msra.mxu0 0.0
    %385 = vmatprep.subr.mxu0 0.0
    %386 = vmatpush1.xpose.msra.mxu0 0.0
    %387 = vmatprep.subr.mxu0 0.0
    %388 = vmatpush1.xpose.msra.mxu0 0.0
    %389 = vmatprep.subr.mxu0 0.0
    %390 = vmatpush1.xpose.msra.mxu0 0.0
    %391 = vmatprep.subr.mxu0 0.0
    %392 = vmatpush1.xpose.msra.mxu0 0.0
    %393 = vmatprep.subr.mxu0 0.0
    %394 = vmatpush1.xpose.msra.mxu0 0.0
    %395 = vmatprep.subr.mxu0 0.0
    %396 = vmatpush1.xpose.msra.mxu0 0.0
    %397 = vmatprep.subr.mxu0 0.0
    %398 = vmatpush1.xpose.msra.mxu0 0.0
    %399 = vmatprep.subr.mxu0 0.0
    %400 = vmatpush1.xpose.msra.mxu0 0.0
    %401 = vmatprep.subr.mxu0 0.0
    %402 = vmatpush1.xpose.msra.mxu0 0.0
    %403 = vmatprep.subr.mxu0 0.0
    %404 = vmatpush1.xpose.msra.mxu0 0.0
    %405 = vmatprep.subr.mxu0 0.0
    %406 = vmatpush1.xpose.msra.mxu0 0.0
    %407 = vmatprep.subr.mxu0 0.0
    %408 = vmatpush1.xpose.msra.mxu0 0.0
    %409 = vmatprep.subr.mxu0 0.0
    %410 = vmatpush1.xpose.msra.mxu0 0.0
    %411 = vmatprep.subr.mxu0 0.0
    %412 = vmatpush1.xpose.msra.mxu0 0.0
    %413 = vmatprep.subr.mxu0 0.0
    %414 = vmatpush1.xpose.msra.mxu0 0.0
    %415 = vmatprep.subr.mxu0 0.0
    %416 = vmatpush1.xpose.msra.mxu0 0.0
    %417 = vmatprep.subr.mxu0 0.0
    %418 = vmatpush1.xpose.msra.mxu0 0.0
    %419 = vmatprep.subr.mxu0 0.0
    %420 = vmatpush1.xpose.msra.mxu0 0.0
    %421 = vmatprep.subr.mxu0 0.0
    %422 = vmatpush1.xpose.msra.mxu0 0.0
    %423 = vmatprep.subr.mxu0 0.0
    %424 = vmatpush1.xpose.msra.mxu0 0.0
    %425 = vmatprep.subr.mxu0 0.0
    %426 = vmatpush1.xpose.msra.mxu0 0.0
    %427 = vmatprep.subr.mxu0 0.0
    %428 = vmatpush1.xpose.msra.mxu0 0.0
    %429 = vmatprep.subr.mxu0 0.0
    %430 = vmatpush1.xpose.msra.mxu0 0.0
    %431 = vmatprep.subr.mxu0 0.0
    %432 = vmatpush1.xpose.msra.mxu0 0.0
    %433 = vmatprep.subr.mxu0 0.0
    %434 = vmatpush1.xpose.msra.mxu0 0.0
    %435 = vmatprep.mubr.f32.mxu0 0.0
    %436 = vmatmul.mubr.f32.gmra.mrb[0].mxu0 %v363
    %v437 = vpop.f32.mrb[0].mxu0
    %v438 = vadd.f32 %v61, %v437
    %v439 = vpop.f32.mrb[0].mxu0
    %440 = vmatprep.mubr.f32.mxu0 0.0
    %441 = vmatmul.mubr.f32.gmra.mrb[0].mxu0 %v365
    %v442 = vpop.f32.mrb[0].mxu0
    %v443 = vadd.f32 %v62, %v442
    %v444 = vpop.f32.mrb[0].mxu0
    %445 = vdwg.mxu0
    %v446 = vsel %vm244, %v438, -inf
    %447 = vmax.xlane.f32.xlu0 %v446
    %v448 = vpop.xlane.xlu0 %447
    %v449 = vsel %vm244, %v443, -inf
    %450 = vmax.xlane.f32.xlu0 %v449
    %v451 = vpop.xlane.xlu0 %450
    %v452 = vsub.f32 %v438, %v448
    %v453 = vsub.f32 %v443, %v451
    %v454 = vmul.f32 %v452, 1.442695
    %v455 = vpow.pop %v454
    %v456 = vmul.f32 %v453, 1.442695
    %v457 = vpow.pop %v456
    %v458 = vsel %vm244, %v455, 0.0
    %459 = vadd.xlane.f32.xlu0 %v458
    %v460 = vpop.xlane.xlu0 %459
    %v461 = vsel %vm244, %v457, 0.0
    %462 = vadd.xlane.f32.xlu0 %v461
    %v463 = vpop.xlane.xlu0 %462
    %v464 = vrcp.pop %v460
    %v465 = vmul.f32 %v455, %v464
    %v466 = vrcp.pop %v463
    %v467 = vmul.f32 %v457, %v466
    %468 = vrot.lane.b32.xlu0 %v146, 56
    %v469 = vpop.permute.xlu0 %468
    %470 = vrot.lane.b32.xlu0 %v151, 56
    %v471 = vpop.permute.xlu0 %470
    %v475 = vsel %vm244, %v465, 0
    %v478 = vsel %vm244, %v467, 0
    %480 = vmatprep.subr.mxu0 0.0
    %481 = vmatpush1.msra.mxu0 %v469
    %482 = vmatprep.subr.mxu0 0.0
    %483 = vmatpush1.msra.mxu0 %v471
    %484 = vmatprep.subr.mxu0 0.0
    %485 = vmatpush1.msra.mxu0 0.0
    %486 = vmatprep.subr.mxu0 0.0
    %487 = vmatpush1.msra.mxu0 0.0
    %488 = vmatprep.subr.mxu0 0.0
    %489 = vmatpush1.msra.mxu0 0.0
    %490 = vmatprep.subr.mxu0 0.0
    %491 = vmatpush1.msra.mxu0 0.0
    %492 = vmatprep.subr.mxu0 0.0
    %493 = vmatpush1.msra.mxu0 0.0
    %494 = vmatprep.subr.mxu0 0.0
    %495 = vmatpush1.msra.mxu0 0.0
    %496 = vmatprep.subr.mxu0 0.0
    %497 = vmatpush1.msra.mxu0 0.0
    %498 = vmatprep.subr.mxu0 0.0
    %499 = vmatpush1.msra.mxu0 0.0
    %500 = vmatprep.subr.mxu0 0.0
    %501 = vmatpush1.msra.mxu0 0.0
    %502 = vmatprep.subr.mxu0 0.0
    %503 = vmatpush1.msra.mxu0 0.0
    %504 = vmatprep.subr.mxu0 0.0
    %505 = vmatpush1.msra.mxu0 0.0
    %506 = vmatprep.subr.mxu0 0.0
    %507 = vmatpush1.msra.mxu0 0.0
    %508 = vmatprep.subr.mxu0 0.0
    %509 = vmatpush1.msra.mxu0 0.0
    %510 = vmatprep.subr.mxu0 0.0
    %511 = vmatpush1.msra.mxu0 0.0
    %512 = vmatprep.subr.mxu0 0.0
    %513 = vmatpush1.msra.mxu0 0.0
    %514 = vmatprep.subr.mxu0 0.0
    %515 = vmatpush1.msra.mxu0 0.0
    %516 = vmatprep.subr.mxu0 0.0
    %517 = vmatpush1.msra.mxu0 0.0
    %518 = vmatprep.subr.mxu0 0.0
    %519 = vmatpush1.msra.mxu0 0.0
    %520 = vmatprep.subr.mxu0 0.0
    %521 = vmatpush1.msra.mxu0 0.0
    %522 = vmatprep.subr.mxu0 0.0
    %523 = vmatpush1.msra.mxu0 0.0
    %524 = vmatprep.subr.mxu0 0.0
    %525 = vmatpush1.msra.mxu0 0.0
    %526 = vmatprep.subr.mxu0 0.0
    %527 = vmatpush1.msra.mxu0 0.0
    %528 = vmatprep.subr.mxu0 0.0
    %529 = vmatpush1.msra.mxu0 0.0
    %530 = vmatprep.subr.mxu0 0.0
    %531 = vmatpush1.msra.mxu0 0.0
    %532 = vmatprep.subr.mxu0 0.0
    %533 = vmatpush1.msra.mxu0 0.0
    %534 = vmatprep.subr.mxu0 0.0
    %535 = vmatpush1.msra.mxu0 0.0
    %536 = vmatprep.subr.mxu0 0.0
    %537 = vmatpush1.msra.mxu0 0.0
    %538 = vmatprep.subr.mxu0 0.0
    %539 = vmatpush1.msra.mxu0 0.0
    %540 = vmatprep.subr.mxu0 0.0
    %541 = vmatpush1.msra.mxu0 0.0
    %542 = vmatprep.subr.mxu0 0.0
    %543 = vmatpush1.msra.mxu0 0.0
    %544 = vmatprep.mubr.f32.mxu0 0.0
    %545 = vmatmul.mubr.f32.gmra.mrb[0].mxu0 %v475
    %v546 = vpop.f32.mrb[0].mxu0
    %v547 = vadd.f32 0.0, %v546
    %v548 = vpop.f32.mrb[0].mxu0
    %549 = vmatprep.mubr.f32.mxu0 0.0
    %550 = vmatmul.mubr.f32.gmra.mrb[0].mxu0 %v478
    %v551 = vpop.f32.mrb[0].mxu0
    %v552 = vadd.f32 0.0, %v551
    %v553 = vpop.f32.mrb[0].mxu0
    %554 = vdwg.mxu0
    %v555 = vld [vmem:[#allocation7 + $0x28] sm:$0xff]
    %v557 = vsel %vm160, %v547, 0
    %v560 = vsel %vm160, %v552, 0
    %562 = vmatprep.subr.mxu0 0.0
    %563 = vmatpush1.msra.mxu0 %v555
    %564 = vmatprep.subr.mxu0 0.0
    %565 = vmatpush1.msra.mxu0 0.0
    %566 = vmatprep.subr.mxu0 0.0
    %567 = vmatpush1.msra.mxu0 0.0
    %568 = vmatprep.subr.mxu0 0.0
    %569 = vmatpush1.msra.mxu0 0.0
    %570 = vmatprep.subr.mxu0 0.0
    %571 = vmatpush1.msra.mxu0 0.0
    %572 = vmatprep.subr.mxu0 0.0
    %573 = vmatpush1.msra.mxu0 0.0
    %574 = vmatprep.subr.mxu0 0.0
    %575 = vmatpush1.msra.mxu0 0.0
    %576 = vmatprep.subr.mxu0 0.0
    %577 = vmatpush1.msra.mxu0 0.0
    %578 = vmatprep.subr.mxu0 0.0
    %579 = vmatpush1.msra.mxu0 0.0
    %580 = vmatprep.subr.mxu0 0.0
    %581 = vmatpush1.msra.mxu0 0.0
    %582 = vmatprep.subr.mxu0 0.0
    %583 = vmatpush1.msra.mxu0 0.0
    %584 = vmatprep.subr.mxu0 0.0
    %585 = vmatpush1.msra.mxu0 0.0
    %586 = vmatprep.subr.mxu0 0.0
    %587 = vmatpush1.msra.mxu0 0.0
    %588 = vmatprep.subr.mxu0 0.0
    %589 = vmatpush1.msra.mxu0 0.0
    %590 = vmatprep.subr.mxu0 0.0
    %591 = vmatpush1.msra.mxu0 0.0
    %592 = vmatprep.subr.mxu0 0.0
    %593 = vmatpush1.msra.mxu0 0.0
    %594 = vmatprep.subr.mxu0 0.0
    %595 = vmatpush1.msra.mxu0 0.0
    %596 = vmatprep.subr.mxu0 0.0
    %597 = vmatpush1.msra.mxu0 0.0
    %598 = vmatprep.subr.mxu0 0.0
    %599 = vmatpush1.msra.mxu0 0.0
    %600 = vmatprep.subr.mxu0 0.0
    %601 = vmatpush1.msra.mxu0 0.0
    %602 = vmatprep.subr.mxu0 0.0
    %603 = vmatpush1.msra.mxu0 0.0
    %604 = vmatprep.subr.mxu0 0.0
    %605 = vmatpush1.msra.mxu0 0.0
    %606 = vmatprep.subr.mxu0 0.0
    %607 = vmatpush1.msra.mxu0 0.0
    %608 = vmatprep.subr.mxu0 0.0
    %609 = vmatpush1.msra.mxu0 0.0
    %610 = vmatprep.subr.mxu0 0.0
    %611 = vmatpush1.msra.mxu0 0.0
    %612 = vmatprep.subr.mxu0 0.0
    %613 = vmatpush1.msra.mxu0 0.0
    %614 = vmatprep.subr.mxu0 0.0
    %615 = vmatpush1.msra.mxu0 0.0
    %616 = vmatprep.subr.mxu0 0.0
    %617 = vmatpush1.msra.mxu0 0.0
    %618 = vmatprep.subr.mxu0 0.0
    %619 = vmatpush1.msra.mxu0 0.0
    %620 = vmatprep.subr.mxu0 0.0
    %621 = vmatpush1.msra.mxu0 0.0
    %622 = vmatprep.subr.mxu0 0.0
    %623 = vmatpush1.msra.mxu0 0.0
    %624 = vmatprep.subr.mxu0 0.0
    %625 = vmatpush1.msra.mxu0 0.0
    %626 = vmatprep.mubr.f32.mxu0 0.0
    %627 = vmatmul.mubr.f32.gmra.mrb[0].mxu0 %v557
    %v628 = vpop.f32.mrb[0].mxu0
    %v629 = vadd.f32 0.0, %v628
    %v630 = vpop.f32.mrb[0].mxu0
    %631 = vmatprep.mubr.f32.mxu0 0.0
    %632 = vmatmul.mubr.f32.gmra.mrb[0].mxu0 %v560
    %v633 = vpop.f32.mrb[0].mxu0
    %v634 = vadd.f32 0.0, %v633
    %v635 = vpop.f32.mrb[0].mxu0
    %636 = vdwg.mxu0
    %v638 = vsel %vm160, %v346, 0
    %v641 = vsel %vm160, %v351, 0
    %643 = vmatprep.subr.mxu0 0.0
    %644 = vmatpush1.msra.mxu0 %v354
    %645 = vmatprep.subr.mxu0 0.0
    %646 = vmatpush1.msra.mxu0 0.0
    %647 = vmatprep.subr.mxu0 0.0
    %648 = vmatpush1.msra.mxu0 0.0
    %649 = vmatprep.subr.mxu0 0.0
    %650 = vmatpush1.msra.mxu0 0.0
    %651 = vmatprep.subr.mxu0 0.0
    %652 = vmatpush1.msra.mxu0 0.0
    %653 = vmatprep.subr.mxu0 0.0
    %654 = vmatpush1.msra.mxu0 0.0
    %655 = vmatprep.subr.mxu0 0.0
    %656 = vmatpush1.msra.mxu0 0.0
    %657 = vmatprep.subr.mxu0 0.0
    %658 = vmatpush1.msra.mxu0 0.0
    %659 = vmatprep.subr.mxu0 0.0
    %660 = vmatpush1.msra.mxu0 0.0
    %661 = vmatprep.subr.mxu0 0.0
    %662 = vmatpush1.msra.mxu0 0.0
    %663 = vmatprep.subr.mxu0 0.0
    %664 = vmatpush1.msra.mxu0 0.0
    %665 = vmatprep.subr.mxu0 0.0
    %666 = vmatpush1.msra.mxu0 0.0
    %667 = vmatprep.subr.mxu0 0.0
    %668 = vmatpush1.msra.mxu0 0.0
    %669 = vmatprep.subr.mxu0 0.0
    %670 = vmatpush1.msra.mxu0 0.0
    %671 = vmatprep.subr.mxu0 0.0
    %672 = vmatpush1.msra.mxu0 0.0
    %673 = vmatprep.subr.mxu0 0.0
    %674 = vmatpush1.msra.mxu0 0.0
    %675 = vmatprep.subr.mxu0 0.0
    %676 = vmatpush1.msra.mxu0 0.0
    %677 = vmatprep.subr.mxu0 0.0
    %678 = vmatpush1.msra.mxu0 0.0
    %679 = vmatprep.subr.mxu0 0.0
    %680 = vmatpush1.msra.mxu0 0.0
    %681 = vmatprep.subr.mxu0 0.0
    %682 = vmatpush1.msra.mxu0 0.0
    %683 = vmatprep.subr.mxu0 0.0
    %684 = vmatpush1.msra.mxu0 0.0
    %685 = vmatprep.subr.mxu0 0.0
    %686 = vmatpush1.msra.mxu0 0.0
    %687 = vmatprep.subr.mxu0 0.0
    %688 = vmatpush1.msra.mxu0 0.0
    %689 = vmatprep.subr.mxu0 0.0
    %690 = vmatpush1.msra.mxu0 0.0
    %691 = vmatprep.subr.mxu0 0.0
    %692 = vmatpush1.msra.mxu0 0.0
    %693 = vmatprep.subr.mxu0 0.0
    %694 = vmatpush1.msra.mxu0 0.0
    %695 = vmatprep.subr.mxu0 0.0
    %696 = vmatpush1.msra.mxu0 0.0
    %697 = vmatprep.subr.mxu0 0.0
    %698 = vmatpush1.msra.mxu0 0.0
    %699 = vmatprep.subr.mxu0 0.0
    %700 = vmatpush1.msra.mxu0 0.0
    %701 = vmatprep.subr.mxu0 0.0
    %702 = vmatpush1.msra.mxu0 0.0
    %703 = vmatprep.subr.mxu0 0.0
    %704 = vmatpush1.msra.mxu0 0.0
    %705 = vmatprep.subr.mxu0 0.0
    %706 = vmatpush1.msra.mxu0 0.0
    %707 = vmatprep.mubr.f32.mxu0 0.0
    %708 = vmatmul.mubr.f32.gmra.mrb[0].mxu0 %v638
    %v709 = vpop.f32.mrb[0].mxu0
    %v710 = vadd.f32 %v629, %v709
    %v711 = vpop.f32.mrb[0].mxu0
    %712 = vmatprep.mubr.f32.mxu0 0.0
    %713 = vmatmul.mubr.f32.gmra.mrb[0].mxu0 %v641
    %v714 = vpop.f32.mrb[0].mxu0
    %v715 = vadd.f32 %v634, %v714
    %v716 = vpop.f32.mrb[0].mxu0
    %717 = vdwg.mxu0
    %718 = vrot.lane.b32.xlu0 %v146, 112
    %v719 = vpop.permute.xlu0 %718
    %720 = vrot.lane.b32.xlu0 %v151, 112
    %v721 = vpop.permute.xlu0 %720
    %722 = vrot.lane.b32.xlu0 %v146, 80
    %v723 = vpop.permute.xlu0 %722
    %724 = vrot.lane.b32.xlu0 %v151, 80
    %v725 = vpop.permute.xlu0 %724
    %v726 = vsel %vm160, %v719, 0
    %v728 = vsel %vm160, %v721, 0
    %v730 = vsel %vm160, %v723, 0
    %v732 = vsel %vm160, %v725, 0
    %734 = vmatprep.subr.mxu0 0.0
    %735 = vmatpush1.xpose.msra.mxu0 %v730
    %736 = vmatprep.subr.mxu0 0.0
    %737 = vmatpush1.xpose.msra.mxu0 %v732
    %738 = vmatprep.subr.mxu0 0.0
    %739 = vmatpush1.xpose.msra.mxu0 0.0
    %740 = vmatprep.subr.mxu0 0.0
    %741 = vmatpush1.xpose.msra.mxu0 0.0
    %742 = vmatprep.subr.mxu0 0.0
    %743 = vmatpush1.xpose.msra.mxu0 0.0
    %744 = vmatprep.subr.mxu0 0.0
    %745 = vmatpush1.xpose.msra.mxu0 0.0
    %746 = vmatprep.subr.mxu0 0.0
    %747 = vmatpush1.xpose.msra.mxu0 0.0
    %748 = vmatprep.subr.mxu0 0.0
    %749 = vmatpush1.xpose.msra.mxu0 0.0
    %750 = vmatprep.subr.mxu0 0.0
    %751 = vmatpush1.xpose.msra.mxu0 0.0
    %752 = vmatprep.subr.mxu0 0.0
    %753 = vmatpush1.xpose.msra.mxu0 0.0
    %754 = vmatprep.subr.mxu0 0.0
    %755 = vmatpush1.xpose.msra.mxu0 0.0
    %756 = vmatprep.subr.mxu0 0.0
    %757 = vmatpush1.xpose.msra.mxu0 0.0
    %758 = vmatprep.subr.mxu0 0.0
    %759 = vmatpush1.xpose.msra.mxu0 0.0
    %760 = vmatprep.subr.mxu0 0.0
    %761 = vmatpush1.xpose.msra.mxu0 0.0
    %762 = vmatprep.subr.mxu0 0.0
    %763 = vmatpush1.xpose.msra.mxu0 0.0
    %764 = vmatprep.subr.mxu0 0.0
    %765 = vmatpush1.xpose.msra.mxu0 0.0
    %766 = vmatprep.subr.mxu0 0.0
    %767 = vmatpush1.xpose.msra.mxu0 0.0
    %768 = vmatprep.subr.mxu0 0.0
    %769 = vmatpush1.xpose.msra.mxu0 0.0
    %770 = vmatprep.subr.mxu0 0.0
    %771 = vmatpush1.xpose.msra.mxu0 0.0
    %772 = vmatprep.subr.mxu0 0.0
    %773 = vmatpush1.xpose.msra.mxu0 0.0
    %774 = vmatprep.subr.mxu0 0.0
    %775 = vmatpush1.xpose.msra.mxu0 0.0
    %776 = vmatprep.subr.mxu0 0.0
    %777 = vmatpush1.xpose.msra.mxu0 0.0
    %778 = vmatprep.subr.mxu0 0.0
    %779 = vmatpush1.xpose.msra.mxu0 0.0
    %780 = vmatprep.subr.mxu0 0.0
    %781 = vmatpush1.xpose.msra.mxu0 0.0
    %782 = vmatprep.subr.mxu0 0.0
    %783 = vmatpush1.xpose.msra.mxu0 0.0
    %784 = vmatprep.subr.mxu0 0.0
    %785 = vmatpush1.xpose.msra.mxu0 0.0
    %786 = vmatprep.subr.mxu0 0.0
    %787 = vmatpush1.xpose.msra.mxu0 0.0
    %788 = vmatprep.subr.mxu0 0.0
    %789 = vmatpush1.xpose.msra.mxu0 0.0
    %790 = vmatprep.subr.mxu0 0.0
    %791 = vmatpush1.xpose.msra.mxu0 0.0
    %792 = vmatprep.subr.mxu0 0.0
    %793 = vmatpush1.xpose.msra.mxu0 0.0
    %794 = vmatprep.subr.mxu0 0.0
    %795 = vmatpush1.xpose.msra.mxu0 0.0
    %796 = vmatprep.subr.mxu0 0.0
    %797 = vmatpush1.xpose.msra.mxu0 0.0
    %798 = vmatprep.mubr.f32.mxu0 0.0
    %799 = vmatmul.mubr.f32.gmra.mrb[0].mxu0 %v726
    %v800 = vpop.f32.mrb[0].mxu0
    %v801 = vadd.f32 %v61, %v800
    %v802 = vpop.f32.mrb[0].mxu0
    %803 = vmatprep.mubr.f32.mxu0 0.0
    %804 = vmatmul.mubr.f32.gmra.mrb[0].mxu0 %v728
    %v805 = vpop.f32.mrb[0].mxu0
    %v806 = vadd.f32 %v62, %v805
    %v807 = vpop.f32.mrb[0].mxu0
    %808 = vdwg.mxu0
    %v809 = vsel %vm244, %v801, -inf
    %810 = vmax.xlane.f32.xlu0 %v809
    %v811 = vpop.xlane.xlu0 %810
    %v812 = vsel %vm244, %v806, -inf
    %813 = vmax.xlane.f32.xlu0 %v812
    %v814 = vpop.xlane.xlu0 %813
    %v815 = vsub.f32 %v801, %v811
    %v816 = vsub.f32 %v806, %v814
    %v817 = vmul.f32 %v815, 1.442695
    %v818 = vpow.pop %v817
    %v819 = vmul.f32 %v816, 1.442695
    %v820 = vpow.pop %v819
    %v821 = vsel %vm244, %v818, 0.0
    %822 = vadd.xlane.f32.xlu0 %v821
    %v823 = vpop.xlane.xlu0 %822
    %v824 = vsel %vm244, %v820, 0.0
    %825 = vadd.xlane.f32.xlu0 %v824
    %v826 = vpop.xlane.xlu0 %825
    %v827 = vrcp.pop %v823
    %v828 = vmul.f32 %v818, %v827
    %v829 = vrcp.pop %v826
    %v830 = vmul.f32 %v820, %v829
    %831 = vrot.lane.b32.xlu0 %v146, 48
    %v832 = vpop.permute.xlu0 %831
    %833 = vrot.lane.b32.xlu0 %v151, 48
    %v834 = vpop.permute.xlu0 %833
    %v838 = vsel %vm244, %v828, 0
    %v841 = vsel %vm244, %v830, 0
    %843 = vmatprep.subr.mxu0 0.0
    %844 = vmatpush1.msra.mxu0 %v832
    %845 = vmatprep.subr.mxu0 0.0
    %846 = vmatpush1.msra.mxu0 %v834
    %847 = vmatprep.subr.mxu0 0.0
    %848 = vmatpush1.msra.mxu0 0.0
    %849 = vmatprep.subr.mxu0 0.0
    %850 = vmatpush1.msra.mxu0 0.0
    %851 = vmatprep.subr.mxu0 0.0
    %852 = vmatpush1.msra.mxu0 0.0
    %853 = vmatprep.subr.mxu0 0.0
    %854 = vmatpush1.msra.mxu0 0.0
    %855 = vmatprep.subr.mxu0 0.0
    %856 = vmatpush1.msra.mxu0 0.0
    %857 = vmatprep.subr.mxu0 0.0
    %858 = vmatpush1.msra.mxu0 0.0
    %859 = vmatprep.subr.mxu0 0.0
    %860 = vmatpush1.msra.mxu0 0.0
    %861 = vmatprep.subr.mxu0 0.0
    %862 = vmatpush1.msra.mxu0 0.0
    %863 = vmatprep.subr.mxu0 0.0
    %864 = vmatpush1.msra.mxu0 0.0
    %865 = vmatprep.subr.mxu0 0.0
    %866 = vmatpush1.msra.mxu0 0.0
    %867 = vmatprep.subr.mxu0 0.0
    %868 = vmatpush1.msra.mxu0 0.0
    %869 = vmatprep.subr.mxu0 0.0
    %870 = vmatpush1.msra.mxu0 0.0
    %871 = vmatprep.subr.mxu0 0.0
    %872 = vmatpush1.msra.mxu0 0.0
    %873 = vmatprep.subr.mxu0 0.0
    %874 = vmatpush1.msra.mxu0 0.0
    %875 = vmatprep.subr.mxu0 0.0
    %876 = vmatpush1.msra.mxu0 0.0
    %877 = vmatprep.subr.mxu0 0.0
    %878 = vmatpush1.msra.mxu0 0.0
    %879 = vmatprep.subr.mxu0 0.0
    %880 = vmatpush1.msra.mxu0 0.0
    %881 = vmatprep.subr.mxu0 0.0
    %882 = vmatpush1.msra.mxu0 0.0
    %883 = vmatprep.subr.mxu0 0.0
    %884 = vmatpush1.msra.mxu0 0.0
    %885 = vmatprep.subr.mxu0 0.0
    %886 = vmatpush1.msra.mxu0 0.0
    %887 = vmatprep.subr.mxu0 0.0
    %888 = vmatpush1.msra.mxu0 0.0
    %889 = vmatprep.subr.mxu0 0.0
    %890 = vmatpush1.msra.mxu0 0.0
    %891 = vmatprep.subr.mxu0 0.0
    %892 = vmatpush1.msra.mxu0 0.0
    %893 = vmatprep.subr.mxu0 0.0
    %894 = vmatpush1.msra.mxu0 0.0
    %895 = vmatprep.subr.mxu0 0.0
    %896 = vmatpush1.msra.mxu0 0.0
    %897 = vmatprep.subr.mxu0 0.0
    %898 = vmatpush1.msra.mxu0 0.0
    %899 = vmatprep.subr.mxu0 0.0
    %900 = vmatpush1.msra.mxu0 0.0
    %901 = vmatprep.subr.mxu0 0.0
    %902 = vmatpush1.msra.mxu0 0.0
    %903 = vmatprep.subr.mxu0 0.0
    %904 = vmatpush1.msra.mxu0 0.0
    %905 = vmatprep.subr.mxu0 0.0
    %906 = vmatpush1.msra.mxu0 0.0
    %907 = vmatprep.mubr.f32.mxu0 0.0
    %908 = vmatmul.mubr.f32.gmra.mrb[0].mxu0 %v838
    %v909 = vpop.f32.mrb[0].mxu0
    %v910 = vadd.f32 0.0, %v909
    %v911 = vpop.f32.mrb[0].mxu0
    %912 = vmatprep.mubr.f32.mxu0 0.0
    %913 = vmatmul.mubr.f32.gmra.mrb[0].mxu0 %v841
    %v914 = vpop.f32.mrb[0].mxu0
    %v915 = vadd.f32 0.0, %v914
    %v916 = vpop.f32.mrb[0].mxu0
    %917 = vdwg.mxu0
    %v918 = vld [vmem:[#allocation7 + $0x30] sm:$0xff]
    %v920 = vsel %vm160, %v910, 0
    %v923 = vsel %vm160, %v915, 0
    %925 = vmatprep.subr.mxu0 0.0
    %926 = vmatpush1.msra.mxu0 %v918
    %927 = vmatprep.subr.mxu0 0.0
    %928 = vmatpush1.msra.mxu0 0.0
    %929 = vmatprep.subr.mxu0 0.0
    %930 = vmatpush1.msra.mxu0 0.0
    %931 = vmatprep.subr.mxu0 0.0
    %932 = vmatpush1.msra.mxu0 0.0
    %933 = vmatprep.subr.mxu0 0.0
    %934 = vmatpush1.msra.mxu0 0.0
    %935 = vmatprep.subr.mxu0 0.0
    %936 = vmatpush1.msra.mxu0 0.0
    %937 = vmatprep.subr.mxu0 0.0
    %938 = vmatpush1.msra.mxu0 0.0
    %939 = vmatprep.subr.mxu0 0.0
    %940 = vmatpush1.msra.mxu0 0.0
    %941 = vmatprep.subr.mxu0 0.0
    %942 = vmatpush1.msra.mxu0 0.0
    %943 = vmatprep.subr.mxu0 0.0
    %944 = vmatpush1.msra.mxu0 0.0
    %945 = vmatprep.subr.mxu0 0.0
    %946 = vmatpush1.msra.mxu0 0.0
    %947 = vmatprep.subr.mxu0 0.0
    %948 = vmatpush1.msra.mxu0 0.0
    %949 = vmatprep.subr.mxu0 0.0
    %950 = vmatpush1.msra.mxu0 0.0
    %951 = vmatprep.subr.mxu0 0.0
    %952 = vmatpush1.msra.mxu0 0.0
    %953 = vmatprep.subr.mxu0 0.0
    %954 = vmatpush1.msra.mxu0 0.0
    %955 = vmatprep.subr.mxu0 0.0
    %956 = vmatpush1.msra.mxu0 0.0
    %957 = vmatprep.subr.mxu0 0.0
    %958 = vmatpush1.msra.mxu0 0.0
    %959 = vmatprep.subr.mxu0 0.0
    %960 = vmatpush1.msra.mxu0 0.0
    %961 = vmatprep.subr.mxu0 0.0
    %962 = vmatpush1.msra.mxu0 0.0
    %963 = vmatprep.subr.mxu0 0.0
    %964 = vmatpush1.msra.mxu0 0.0
    %965 = vmatprep.subr.mxu0 0.0
    %966 = vmatpush1.msra.mxu0 0.0
    %967 = vmatprep.subr.mxu0 0.0
    %968 = vmatpush1.msra.mxu0 0.0
    %969 = vmatprep.subr.mxu0 0.0
    %970 = vmatpush1.msra.mxu0 0.0
    %971 = vmatprep.subr.mxu0 0.0
    %972 = vmatpush1.msra.mxu0 0.0
    %973 = vmatprep.subr.mxu0 0.0
    %974 = vmatpush1.msra.mxu0 0.0
    %975 = vmatprep.subr.mxu0 0.0
    %976 = vmatpush1.msra.mxu0 0.0
    %977 = vmatprep.subr.mxu0 0.0
    %978 = vmatpush1.msra.mxu0 0.0
    %979 = vmatprep.subr.mxu0 0.0
    %980 = vmatpush1.msra.mxu0 0.0
    %981 = vmatprep.subr.mxu0 0.0
    %982 = vmatpush1.msra.mxu0 0.0
    %983 = vmatprep.subr.mxu0 0.0
    %984 = vmatpush1.msra.mxu0 0.0
    %985 = vmatprep.subr.mxu0 0.0
    %986 = vmatpush1.msra.mxu0 0.0
    %987 = vmatprep.subr.mxu0 0.0
    %988 = vmatpush1.msra.mxu0 0.0
    %989 = vmatprep.mubr.f32.mxu0 0.0
    %990 = vmatmul.mubr.f32.gmra.mrb[0].mxu0 %v920
    %v991 = vpop.f32.mrb[0].mxu0
    %v992 = vadd.f32 0.0, %v991
    %v993 = vpop.f32.mrb[0].mxu0
    %994 = vmatprep.mubr.f32.mxu0 0.0
    %995 = vmatmul.mubr.f32.gmra.mrb[0].mxu0 %v923
    %v996 = vpop.f32.mrb[0].mxu0
    %v997 = vadd.f32 0.0, %v996
    %v998 = vpop.f32.mrb[0].mxu0
    %999 = vdwg.mxu0
    %v1000 = vadd.f32 %v710, %v992
    %v1001 = vadd.f32 %v715, %v997
    %1002 = vrot.lane.b32.xlu0 %v146, 104
    %v1003 = vpop.permute.xlu0 %1002
    %1004 = vrot.lane.b32.xlu0 %v151, 104
    %v1005 = vpop.permute.xlu0 %1004
    %1006 = vrot.lane.b32.xlu0 %v146, 72
    %v1007 = vpop.permute.xlu0 %1006
    %1008 = vrot.lane.b32.xlu0 %v151, 72
    %v1009 = vpop.permute.xlu0 %1008
    %v1010 = vsel %vm160, %v1003, 0
    %v1012 = vsel %vm160, %v1005, 0
    %v1014 = vsel %vm160, %v1007, 0
    %v1016 = vsel %vm160, %v1009, 0
    %1018 = vmatprep.subr.mxu0 0.0
    %1019 = vmatpush1.xpose.msra.mxu0 %v1014
    %1020 = vmatprep.subr.mxu0 0.0
    %1021 = vmatpush1.xpose.msra.mxu0 %v1016
    %1022 = vmatprep.subr.mxu0 0.0
    %1023 = vmatpush1.xpose.msra.mxu0 0.0
    %1024 = vmatprep.subr.mxu0 0.0
    %1025 = vmatpush1.xpose.msra.mxu0 0.0
    %1026 = vmatprep.subr.mxu0 0.0
    %1027 = vmatpush1.xpose.msra.mxu0 0.0
    %1028 = vmatprep.subr.mxu0 0.0
    %1029 = vmatpush1.xpose.msra.mxu0 0.0
    %1030 = vmatprep.subr.mxu0 0.0
    %1031 = vmatpush1.xpose.msra.mxu0 0.0
    %1032 = vmatprep.subr.mxu0 0.0
    %1033 = vmatpush1.xpose.msra.mxu0 0.0
    %1034 = vmatprep.subr.mxu0 0.0
    %1035 = vmatpush1.xpose.msra.mxu0 0.0
    %1036 = vmatprep.subr.mxu0 0.0
    %1037 = vmatpush1.xpose.msra.mxu0 0.0
    %1038 = vmatprep.subr.mxu0 0.0
    %1039 = vmatpush1.xpose.msra.mxu0 0.0
    %1040 = vmatprep.subr.mxu0 0.0
    %1041 = vmatpush1.xpose.msra.mxu0 0.0
    %1042 = vmatprep.subr.mxu0 0.0
    %1043 = vmatpush1.xpose.msra.mxu0 0.0
    %1044 = vmatprep.subr.mxu0 0.0
    %1045 = vmatpush1.xpose.msra.mxu0 0.0
    %1046 = vmatprep.subr.mxu0 0.0
    %1047 = vmatpush1.xpose.msra.mxu0 0.0
    %1048 = vmatprep.subr.mxu0 0.0
    %1049 = vmatpush1.xpose.msra.mxu0 0.0
    %1050 = vmatprep.subr.mxu0 0.0
    %1051 = vmatpush1.xpose.msra.mxu0 0.0
    %1052 = vmatprep.subr.mxu0 0.0
    %1053 = vmatpush1.xpose.msra.mxu0 0.0
    %1054 = vmatprep.subr.mxu0 0.0
    %1055 = vmatpush1.xpose.msra.mxu0 0.0
    %1056 = vmatprep.subr.mxu0 0.0
    %1057 = vmatpush1.xpose.msra.mxu0 0.0
    %1058 = vmatprep.subr.mxu0 0.0
    %1059 = vmatpush1.xpose.msra.mxu0 0.0
    %1060 = vmatprep.subr.mxu0 0.0
    %1061 = vmatpush1.xpose.msra.mxu0 0.0
    %1062 = vmatprep.subr.mxu0 0.0
    %1063 = vmatpush1.xpose.msra.mxu0 0.0
    %1064 = vmatprep.subr.mxu0 0.0
    %1065 = vmatpush1.xpose.msra.mxu0 0.0
    %1066 = vmatprep.subr.mxu0 0.0
    %1067 = vmatpush1.xpose.msra.mxu0 0.0
    %1068 = vmatprep.subr.mxu0 0.0
    %1069 = vmatpush1.xpose.msra.mxu0 0.0
    %1070 = vmatprep.subr.mxu0 0.0
    %1071 = vmatpush1.xpose.msra.mxu0 0.0
    %1072 = vmatprep.subr.mxu0 0.0
    %1073 = vmatpush1.xpose.msra.mxu0 0.0
    %1074 = vmatprep.subr.mxu0 0.0
    %1075 = vmatpush1.xpose.msra.mxu0 0.0
    %1076 = vmatprep.subr.mxu0 0.0
    %1077 = vmatpush1.xpose.msra.mxu0 0.0
    %1078 = vmatprep.subr.mxu0 0.0
    %1079 = vmatpush1.xpose.msra.mxu0 0.0
    %1080 = vmatprep.subr.mxu0 0.0
    %1081 = vmatpush1.xpose.msra.mxu0 0.0
    %1082 = vmatprep.mubr.f32.mxu0 0.0
    %1083 = vmatmul.mubr.f32.gmra.mrb[0].mxu0 %v1010
    %v1084 = vpop.f32.mrb[0].mxu0
    %v1085 = vadd.f32 %v61, %v1084
    %v1086 = vpop.f32.mrb[0].mxu0
    %1087 = vmatprep.mubr.f32.mxu0 0.0
    %1088 = vmatmul.mubr.f32.gmra.mrb[0].mxu0 %v1012
    %v1089 = vpop.f32.mrb[0].mxu0
    %v1090 = vadd.f32 %v62, %v1089
    %v1091 = vpop.f32.mrb[0].mxu0
    %1092 = vdwg.mxu0
    %v1093 = vsel %vm244, %v1085, -inf
    %1094 = vmax.xlane.f32.xlu0 %v1093
    %v1095 = vpop.xlane.xlu0 %1094
    %v1096 = vsel %vm244, %v1090, -inf
    %1097 = vmax.xlane.f32.xlu0 %v1096
    %v1098 = vpop.xlane.xlu0 %1097
    %v1099 = vsub.f32 %v1085, %v1095
    %v1100 = vsub.f32 %v1090, %v1098
    %v1101 = vmul.f32 %v1099, 1.442695
    %v1102 = vpow.pop %v1101
    %v1103 = vmul.f32 %v1100, 1.442695
    %v1104 = vpow.pop %v1103
    %v1105 = vsel %vm244, %v1102, 0.0
    %1106 = vadd.xlane.f32.xlu0 %v1105
    %v1107 = vpop.xlane.xlu0 %1106
    %v1108 = vsel %vm244, %v1104, 0.0
    %1109 = vadd.xlane.f32.xlu0 %v1108
    %v1110 = vpop.xlane.xlu0 %1109
    %v1111 = vrcp.pop %v1107
    %v1112 = vmul.f32 %v1102, %v1111
    %v1113 = vrcp.pop %v1110
    %v1114 = vmul.f32 %v1104, %v1113
    %1115 = vrot.lane.b32.xlu0 %v146, 40
    %v1116 = vpop.permute.xlu0 %1115
    %1117 = vrot.lane.b32.xlu0 %v151, 40
    %v1118 = vpop.permute.xlu0 %1117
    %v1122 = vsel %vm244, %v1112, 0
    %v1125 = vsel %vm244, %v1114, 0
    %1127 = vmatprep.subr.mxu0 0.0
    %1128 = vmatpush1.msra.mxu0 %v1116
    %1129 = vmatprep.subr.mxu0 0.0
    %1130 = vmatpush1.msra.mxu0 %v1118
    %1131 = vmatprep.subr.mxu0 0.0
    %1132 = vmatpush1.msra.mxu0 0.0
    %1133 = vmatprep.subr.mxu0 0.0
    %1134 = vmatpush1.msra.mxu0 0.0
    %1135 = vmatprep.subr.mxu0 0.0
    %1136 = vmatpush1.msra.mxu0 0.0
    %1137 = vmatprep.subr.mxu0 0.0
    %1138 = vmatpush1.msra.mxu0 0.0
    %1139 = vmatprep.subr.mxu0 0.0
    %1140 = vmatpush1.msra.mxu0 0.0
    %1141 = vmatprep.subr.mxu0 0.0
    %1142 = vmatpush1.msra.mxu0 0.0
    %1143 = vmatprep.subr.mxu0 0.0
    %1144 = vmatpush1.msra.mxu0 0.0
    %1145 = vmatprep.subr.mxu0 0.0
    %1146 = vmatpush1.msra.mxu0 0.0
    %1147 = vmatprep.subr.mxu0 0.0
    %1148 = vmatpush1.msra.mxu0 0.0
    %1149 = vmatprep.subr.mxu0 0.0
    %1150 = vmatpush1.msra.mxu0 0.0
    %1151 = vmatprep.subr.mxu0 0.0
    %1152 = vmatpush1.msra.mxu0 0.0
    %1153 = vmatprep.subr.mxu0 0.0
    %1154 = vmatpush1.msra.mxu0 0.0
    %1155 = vmatprep.subr.mxu0 0.0
    %1156 = vmatpush1.msra.mxu0 0.0
    %1157 = vmatprep.subr.mxu0 0.0
    %1158 = vmatpush1.msra.mxu0 0.0
    %1159 = vmatprep.subr.mxu0 0.0
    %1160 = vmatpush1.msra.mxu0 0.0
    %1161 = vmatprep.subr.mxu0 0.0
    %1162 = vmatpush1.msra.mxu0 0.0
    %1163 = vmatprep.subr.mxu0 0.0
    %1164 = vmatpush1.msra.mxu0 0.0
    %1165 = vmatprep.subr.mxu0 0.0
    %1166 = vmatpush1.msra.mxu0 0.0
    %1167 = vmatprep.subr.mxu0 0.0
    %1168 = vmatpush1.msra.mxu0 0.0
    %1169 = vmatprep.subr.mxu0 0.0
    %1170 = vmatpush1.msra.mxu0 0.0
    %1171 = vmatprep.subr.mxu0 0.0
    %1172 = vmatpush1.msra.mxu0 0.0
    %1173 = vmatprep.subr.mxu0 0.0
    %1174 = vmatpush1.msra.mxu0 0.0
    %1175 = vmatprep.subr.mxu0 0.0
    %1176 = vmatpush1.msra.mxu0 0.0
    %1177 = vmatprep.subr.mxu0 0.0
    %1178 = vmatpush1.msra.mxu0 0.0
    %1179 = vmatprep.subr.mxu0 0.0
    %1180 = vmatpush1.msra.mxu0 0.0
    %1181 = vmatprep.subr.mxu0 0.0
    %1182 = vmatpush1.msra.mxu0 0.0
    %1183 = vmatprep.subr.mxu0 0.0
    %1184 = vmatpush1.msra.mxu0 0.0
    %1185 = vmatprep.subr.mxu0 0.0
    %1186 = vmatpush1.msra.mxu0 0.0
    %1187 = vmatprep.subr.mxu0 0.0
    %1188 = vmatpush1.msra.mxu0 0.0
    %1189 = vmatprep.subr.mxu0 0.0
    %1190 = vmatpush1.msra.mxu0 0.0
    %1191 = vmatprep.mubr.f32.mxu0 0.0
    %1192 = vmatmul.mubr.f32.gmra.mrb[0].mxu0 %v1122
    %v1193 = vpop.f32.mrb[0].mxu0
    %v1194 = vadd.f32 0.0, %v1193
    %v1195 = vpop.f32.mrb[0].mxu0
    %1196 = vmatprep.mubr.f32.mxu0 0.0
    %1197 = vmatmul.mubr.f32.gmra.mrb[0].mxu0 %v1125
    %v1198 = vpop.f32.mrb[0].mxu0
    %v1199 = vadd.f32 0.0, %v1198
    %v1200 = vpop.f32.mrb[0].mxu0
    %1201 = vdwg.mxu0
    %v1202 = vld [vmem:[#allocation7 + $0x38] sm:$0xff]
    %v1204 = vsel %vm160, %v1194, 0
    %v1207 = vsel %vm160, %v1199, 0
    %1209 = vmatprep.subr.mxu0 0.0
    %1210 = vmatpush1.msra.mxu0 %v1202
    %1211 = vmatprep.subr.mxu0 0.0
    %1212 = vmatpush1.msra.mxu0 0.0
    %1213 = vmatprep.subr.mxu0 0.0
    %1214 = vmatpush1.msra.mxu0 0.0
    %1215 = vmatprep.subr.mxu0 0.0
    %1216 = vmatpush1.msra.mxu0 0.0
    %1217 = vmatprep.subr.mxu0 0.0
    %1218 = vmatpush1.msra.mxu0 0.0
    %1219 = vmatprep.subr.mxu0 0.0
    %1220 = vmatpush1.msra.mxu0 0.0
    %1221 = vmatprep.subr.mxu0 0.0
    %1222 = vmatpush1.msra.mxu0 0.0
    %1223 = vmatprep.subr.mxu0 0.0
    %1224 = vmatpush1.msra.mxu0 0.0
    %1225 = vmatprep.subr.mxu0 0.0
    %1226 = vmatpush1.msra.mxu0 0.0
    %1227 = vmatprep.subr.mxu0 0.0
    %1228 = vmatpush1.msra.mxu0 0.0
    %1229 = vmatprep.subr.mxu0 0.0
    %1230 = vmatpush1.msra.mxu0 0.0
    %1231 = vmatprep.subr.mxu0 0.0
    %1232 = vmatpush1.msra.mxu0 0.0
    %1233 = vmatprep.subr.mxu0 0.0
    %1234 = vmatpush1.msra.mxu0 0.0
    %1235 = vmatprep.subr.mxu0 0.0
    %1236 = vmatpush1.msra.mxu0 0.0
    %1237 = vmatprep.subr.mxu0 0.0
    %1238 = vmatpush1.msra.mxu0 0.0
    %1239 = vmatprep.subr.mxu0 0.0
    %1240 = vmatpush1.msra.mxu0 0.0
    %1241 = vmatprep.subr.mxu0 0.0
    %1242 = vmatpush1.msra.mxu0 0.0
    %1243 = vmatprep.subr.mxu0 0.0
    %1244 = vmatpush1.msra.mxu0 0.0
    %1245 = vmatprep.subr.mxu0 0.0
    %1246 = vmatpush1.msra.mxu0 0.0
    %1247 = vmatprep.subr.mxu0 0.0
    %1248 = vmatpush1.msra.mxu0 0.0
    %1249 = vmatprep.subr.mxu0 0.0
    %1250 = vmatpush1.msra.mxu0 0.0
    %1251 = vmatprep.subr.mxu0 0.0
    %1252 = vmatpush1.msra.mxu0 0.0
    %1253 = vmatprep.subr.mxu0 0.0
    %1254 = vmatpush1.msra.mxu0 0.0
    %1255 = vmatprep.subr.mxu0 0.0
    %1256 = vmatpush1.msra.mxu0 0.0
    %1257 = vmatprep.subr.mxu0 0.0
    %1258 = vmatpush1.msra.mxu0 0.0
    %1259 = vmatprep.subr.mxu0 0.0
    %1260 = vmatpush1.msra.mxu0 0.0
    %1261 = vmatprep.subr.mxu0 0.0
    %1262 = vmatpush1.msra.mxu0 0.0
    %1263 = vmatprep.subr.mxu0 0.0
    %1264 = vmatpush1.msra.mxu0 0.0
    %1265 = vmatprep.subr.mxu0 0.0
    %1266 = vmatpush1.msra.mxu0 0.0
    %1267 = vmatprep.subr.mxu0 0.0
    %1268 = vmatpush1.msra.mxu0 0.0
    %1269 = vmatprep.subr.mxu0 0.0
    %1270 = vmatpush1.msra.mxu0 0.0
    %1271 = vmatprep.subr.mxu0 0.0
    %1272 = vmatpush1.msra.mxu0 0.0
    %1273 = vmatprep.mubr.f32.mxu0 0.0
    %1274 = vmatmul.mubr.f32.gmra.mrb[0].mxu0 %v1204
    %v1275 = vpop.f32.mrb[0].mxu0
    %v1276 = vadd.f32 0.0, %v1275
    %v1277 = vpop.f32.mrb[0].mxu0
    %1278 = vmatprep.mubr.f32.mxu0 0.0
    %1279 = vmatmul.mubr.f32.gmra.mrb[0].mxu0 %v1207
    %v1280 = vpop.f32.mrb[0].mxu0
    %v1281 = vadd.f32 0.0, %v1280
    %v1282 = vpop.f32.mrb[0].mxu0
    %1283 = vdwg.mxu0
    %v1284 = vadd.f32 %v1000, %v1276
    %v1285 = vadd.f32 %v1001, %v1281
    %v1286 = vld [vmem:[%s3 + $0x1] sm:$0x1]
    %v1287 = vlaneseq
    %v1288 = vshrl.u32 %v1287, 7
    %v1289 = vsub.s32 0, %v1288
    %v1290 = vrot.slane %v1286, %v1289
    %v1291 = vadd.f32 %v1284, %v1290
    %v1292 = vadd.f32 %v1285, %v1290
    %v1293 = vld [vmem:[%s3 + $0x4] sm:$0x1]
    %v1294 = vld [vmem:[%s3 + $0x5] sm:$0x1]
    %v1295 = vld [vmem:[%s3 + $0x6] sm:$0x1]
    %v1296 = vld [vmem:[%s3 + $0x7] sm:$0x1]
    %v1297 = vadd.f32 %v59, %v1291
    %v1298 = vadd.f32 %v60, %v1292
    %v1299 = vsel %vm72, %v1297, 0.0
    %1300 = vadd.xlane.f32.xlu0 %v1299
    %v1301 = vpop.xlane.xlu0 %1300
    %v1302 = vsel %vm72, %v1298, 0.0
    %1303 = vadd.xlane.f32.xlu0 %v1302
    %v1304 = vpop.xlane.xlu0 %1303
    %v1305 = vrcp.pop 32.0
    %v1306 = vmul.f32 %v1301, %v1305
    %v1307 = vmul.f32 %v1304, %v1305
    %v1308 = vsub.f32 %v1297, %v1306
    %v1309 = vsub.f32 %v1298, %v1307
    %v1310 = vmul.f32 %v1308, %v1308
    %v1311 = vmul.f32 %v1309, %v1309
    %v1312 = vsel %vm72, %v1310, 0.0
    %1313 = vadd.xlane.f32.xlu0 %v1312
    %v1314 = vpop.xlane.xlu0 %1313
    %v1315 = vsel %vm72, %v1311, 0.0
    %1316 = vadd.xlane.f32.xlu0 %v1315
    %v1317 = vpop.xlane.xlu0 %1316
    %v1318 = vmul.f32 %v1314, %v1305
    %v1319 = vmul.f32 %v1317, %v1305
    %v1320 = vadd.f32 %v1318, 1e-05
    %v1321 = vadd.f32 %v1319, 1e-05
    %v1322 = vrsqrt.pop %v1320
    %v1323 = vrsqrt.pop %v1321
    %v1324 = vmul.f32 %v1308, %v1322
    %v1325 = vmul.f32 %v1309, %v1323
    %v1326 = vlaneseq
    %v1327 = vshrl.u32 %v1326, 7
    %v1328 = vsub.s32 0, %v1327
    %v1329 = vrot.slane %v1293, %v1328
    %v1330 = vmul.f32 %v1324, %v1329
    %v1331 = vmul.f32 %v1325, %v1329
    %v1332 = vlaneseq
    %v1333 = vshrl.u32 %v1332, 7
    %v1334 = vsub.s32 0, %v1333
    %v1335 = vrot.slane %v1294, %v1334
    %v1336 = vadd.f32 %v1330, %v1335
    %v1337 = vadd.f32 %v1331, %v1335
    %v1338 = vld [vmem:[#allocation7 + $0x40] sm:$0xff]
    %v1339 = vld [vmem:[#allocation7 + $0x48] sm:$0xff]
    %v1340 = vld [vmem:[#allocation7 + $0x50] sm:$0xff]
    %v1341 = vld [vmem:[#allocation7 + $0x58] sm:$0xff]
    %v1342 = vld [vmem:[%s3 + $0x2] sm:$0x1]
    %v1343 = vlaneseq
    %v1344 = vshrl.u32 %v1343, 7
    %v1345 = vsub.s32 0, %v1344
    %v1346 = vrot.slane %v1342, %v1345
    %v1348 = vsel %vm72, %v1336, 0
    %v1351 = vsel %vm72, %v1337, 0
    %1353 = vmatprep.subr.mxu0 0.0
    %1354 = vmatpush1.msra.mxu0 %v1338
    %1355 = vmatprep.subr.mxu0 0.0
    %1356 = vmatpush1.msra.mxu0 %v1339
    %1357 = vmatprep.subr.mxu0 0.0
    %1358 = vmatpush1.msra.mxu0 %v1340
    %1359 = vmatprep.subr.mxu0 0.0
    %1360 = vmatpush1.msra.mxu0 %v1341
    %1361 = vmatprep.subr.mxu0 0.0
    %1362 = vmatpush1.msra.mxu0 0.0
    %1363 = vmatprep.subr.mxu0 0.0
    %1364 = vmatpush1.msra.mxu0 0.0
    %1365 = vmatprep.subr.mxu0 0.0
    %1366 = vmatpush1.msra.mxu0 0.0
    %1367 = vmatprep.subr.mxu0 0.0
    %1368 = vmatpush1.msra.mxu0 0.0
    %1369 = vmatprep.subr.mxu0 0.0
    %1370 = vmatpush1.msra.mxu0 0.0
    %1371 = vmatprep.subr.mxu0 0.0
    %1372 = vmatpush1.msra.mxu0 0.0
    %1373 = vmatprep.subr.mxu0 0.0
    %1374 = vmatpush1.msra.mxu0 0.0
    %1375 = vmatprep.subr.mxu0 0.0
    %1376 = vmatpush1.msra.mxu0 0.0
    %1377 = vmatprep.subr.mxu0 0.0
    %1378 = vmatpush1.msra.mxu0 0.0
    %1379 = vmatprep.subr.mxu0 0.0
    %1380 = vmatpush1.msra.mxu0 0.0
    %1381 = vmatprep.subr.mxu0 0.0
    %1382 = vmatpush1.msra.mxu0 0.0
    %1383 = vmatprep.subr.mxu0 0.0
    %1384 = vmatpush1.msra.mxu0 0.0
    %1385 = vmatprep.subr.mxu0 0.0
    %1386 = vmatpush1.msra.mxu0 0.0
    %1387 = vmatprep.subr.mxu0 0.0
    %1388 = vmatpush1.msra.mxu0 0.0
    %1389 = vmatprep.subr.mxu0 0.0
    %1390 = vmatpush1.msra.mxu0 0.0
    %1391 = vmatprep.subr.mxu0 0.0
    %1392 = vmatpush1.msra.mxu0 0.0
    %1393 = vmatprep.subr.mxu0 0.0
    %1394 = vmatpush1.msra.mxu0 0.0
    %1395 = vmatprep.subr.mxu0 0.0
    %1396 = vmatpush1.msra.mxu0 0.0
    %1397 = vmatprep.subr.mxu0 0.0
    %1398 = vmatpush1.msra.mxu0 0.0
    %1399 = vmatprep.subr.mxu0 0.0
    %1400 = vmatpush1.msra.mxu0 0.0
    %1401 = vmatprep.subr.mxu0 0.0
    %1402 = vmatpush1.msra.mxu0 0.0
    %1403 = vmatprep.subr.mxu0 0.0
    %1404 = vmatpush1.msra.mxu0 0.0
    %1405 = vmatprep.subr.mxu0 0.0
    %1406 = vmatpush1.msra.mxu0 0.0
    %1407 = vmatprep.subr.mxu0 0.0
    %1408 = vmatpush1.msra.mxu0 0.0
    %1409 = vmatprep.subr.mxu0 0.0
    %1410 = vmatpush1.msra.mxu0 0.0
    %1411 = vmatprep.subr.mxu0 0.0
    %1412 = vmatpush1.msra.mxu0 0.0
    %1413 = vmatprep.subr.mxu0 0.0
    %1414 = vmatpush1.msra.mxu0 0.0
    %1415 = vmatprep.subr.mxu0 0.0
    %1416 = vmatpush1.msra.mxu0 0.0
    %1417 = vmatprep.mubr.f32.mxu0 0.0
    %1418 = vmatmul.mubr.f32.gmra.mrb[0].mxu0 %v1348
    %v1419 = vpop.f32.mrb[0].mxu0
    %v1420 = vadd.f32 %v1346, %v1419
    %v1421 = vpop.f32.mrb[0].mxu0
    %1422 = vmatprep.mubr.f32.mxu0 0.0
    %1423 = vmatmul.mubr.f32.gmra.mrb[0].mxu0 %v1351
    %v1424 = vpop.f32.mrb[0].mxu0
    %v1425 = vadd.f32 %v1346, %v1424
    %v1426 = vpop.f32.mrb[0].mxu0
    %1427 = vdwg.mxu0
    %v1428 = vmax.f32 %v1420, 0.0
    %v1429 = vmax.f32 %v1425, 0.0
    %v1430 = vld [vmem:[#allocation7 + $0x60] sm:$0xff]
    %v1431 = vld [vmem:[#allocation7 + $0x68] sm:$0xff]
    %v1432 = vld [vmem:[#allocation7 + $0x70] sm:$0xff]
    %v1433 = vld [vmem:[#allocation7 + $0x78] sm:$0xff]
    %v1434 = vld [vmem:[#allocation7 + $0x80] sm:$0xff]
    %v1435 = vld [vmem:[#allocation7 + $0x88] sm:$0xff]
    %v1436 = vld [vmem:[#allocation7 + $0x90] sm:$0xff]
    %v1437 = vld [vmem:[#allocation7 + $0x98] sm:$0xff]
    %v1438 = vld [vmem:[%s3 + $0x3] sm:$0x1]
    %v1439 = vlaneseq
    %v1440 = vshrl.u32 %v1439, 7
    %v1441 = vsub.s32 0, %v1440
    %v1442 = vrot.slane %v1438, %v1441
    %vm1443 = vcmask 523264
    %v1445 = vsel %vm1443, %v1428, 0
    %v1448 = vsel %vm1443, %v1429, 0
    %1450 = vmatprep.subr.mxu0 0.0
    %1451 = vmatpush1.msra.mxu0 %v1430
    %1452 = vmatprep.subr.mxu0 0.0
    %1453 = vmatpush1.msra.mxu0 %v1431
    %1454 = vmatprep.subr.mxu0 0.0
    %1455 = vmatpush1.msra.mxu0 %v1432
    %1456 = vmatprep.subr.mxu0 0.0
    %1457 = vmatpush1.msra.mxu0 %v1433
    %1458 = vmatprep.subr.mxu0 0.0
    %1459 = vmatpush1.msra.mxu0 %v1434
    %1460 = vmatprep.subr.mxu0 0.0
    %1461 = vmatpush1.msra.mxu0 %v1435
    %1462 = vmatprep.subr.mxu0 0.0
    %1463 = vmatpush1.msra.mxu0 %v1436
    %1464 = vmatprep.subr.mxu0 0.0
    %1465 = vmatpush1.msra.mxu0 %v1437
    %1466 = vmatprep.subr.mxu0 0.0
    %1467 = vmatpush1.msra.mxu0 0.0
    %1468 = vmatprep.subr.mxu0 0.0
    %1469 = vmatpush1.msra.mxu0 0.0
    %1470 = vmatprep.subr.mxu0 0.0
    %1471 = vmatpush1.msra.mxu0 0.0
    %1472 = vmatprep.subr.mxu0 0.0
    %1473 = vmatpush1.msra.mxu0 0.0
    %1474 = vmatprep.subr.mxu0 0.0
    %1475 = vmatpush1.msra.mxu0 0.0
    %1476 = vmatprep.subr.mxu0 0.0
    %1477 = vmatpush1.msra.mxu0 0.0
    %1478 = vmatprep.subr.mxu0 0.0
    %1479 = vmatpush1.msra.mxu0 0.0
    %1480 = vmatprep.subr.mxu0 0.0
    %1481 = vmatpush1.msra.mxu0 0.0
    %1482 = vmatprep.subr.mxu0 0.0
    %1483 = vmatpush1.msra.mxu0 0.0
    %1484 = vmatprep.subr.mxu0 0.0
    %1485 = vmatpush1.msra.mxu0 0.0
    %1486 = vmatprep.subr.mxu0 0.0
    %1487 = vmatpush1.msra.mxu0 0.0
    %1488 = vmatprep.subr.mxu0 0.0
    %1489 = vmatpush1.msra.mxu0 0.0
    %1490 = vmatprep.subr.mxu0 0.0
    %1491 = vmatpush1.msra.mxu0 0.0
    %1492 = vmatprep.subr.mxu0 0.0
    %1493 = vmatpush1.msra.mxu0 0.0
    %1494 = vmatprep.subr.mxu0 0.0
    %1495 = vmatpush1.msra.mxu0 0.0
    %1496 = vmatprep.subr.mxu0 0.0
    %1497 = vmatpush1.msra.mxu0 0.0
    %1498 = vmatprep.subr.mxu0 0.0
    %1499 = vmatpush1.msra.mxu0 0.0
    %1500 = vmatprep.subr.mxu0 0.0
    %1501 = vmatpush1.msra.mxu0 0.0
    %1502 = vmatprep.subr.mxu0 0.0
    %1503 = vmatpush1.msra.mxu0 0.0
    %1504 = vmatprep.subr.mxu0 0.0
    %1505 = vmatpush1.msra.mxu0 0.0
    %1506 = vmatprep.subr.mxu0 0.0
    %1507 = vmatpush1.msra.mxu0 0.0
    %1508 = vmatprep.subr.mxu0 0.0
    %1509 = vmatpush1.msra.mxu0 0.0
    %1510 = vmatprep.subr.mxu0 0.0
    %1511 = vmatpush1.msra.mxu0 0.0
    %1512 = vmatprep.subr.mxu0 0.0
    %1513 = vmatpush1.msra.mxu0 0.0
    %1514 = vmatprep.mubr.f32.mxu0 0.0
    %1515 = vmatmul.mubr.f32.gmra.mrb[0].mxu0 %v1445
    %v1516 = vpop.f32.mrb[0].mxu0
    %v1517 = vadd.f32 %v1442, %v1516
    %v1518 = vpop.f32.mrb[0].mxu0
    %1519 = vmatprep.mubr.f32.mxu0 0.0
    %1520 = vmatmul.mubr.f32.gmra.mrb[0].mxu0 %v1448
    %v1521 = vpop.f32.mrb[0].mxu0
    %v1522 = vadd.f32 %v1442, %v1521
    %v1523 = vpop.f32.mrb[0].mxu0
    %1524 = vdwg.mxu0
    %v1525 = vadd.f32 %v1336, %v1517
    %v1526 = vadd.f32 %v1337, %v1522
    %v1527 = vsel %vm72, %v1525, 0.0
    %1528 = vadd.xlane.f32.xlu0 %v1527
    %v1529 = vpop.xlane.xlu0 %1528
    %v1530 = vsel %vm72, %v1526, 0.0
    %1531 = vadd.xlane.f32.xlu0 %v1530
    %v1532 = vpop.xlane.xlu0 %1531
    %v1533 = vmul.f32 %v1529, %v1305
    %v1534 = vmul.f32 %v1532, %v1305
    %v1535 = vsub.f32 %v1525, %v1533
    %v1536 = vsub.f32 %v1526, %v1534
    %v1537 = vmul.f32 %v1535, %v1535
    %v1538 = vmul.f32 %v1536, %v1536
    %v1539 = vsel %vm72, %v1537, 0.0
    %1540 = vadd.xlane.f32.xlu0 %v1539
    %v1541 = vpop.xlane.xlu0 %1540
    %v1542 = vsel %vm72, %v1538, 0.0
    %1543 = vadd.xlane.f32.xlu0 %v1542
    %v1544 = vpop.xlane.xlu0 %1543
    %v1545 = vmul.f32 %v1541, %v1305
    %v1546 = vmul.f32 %v1544, %v1305
    %v1547 = vadd.f32 %v1545, 1e-05
    %v1548 = vadd.f32 %v1546, 1e-05
    %v1549 = vrsqrt.pop %v1547
    %v1550 = vrsqrt.pop %v1548
    %v1551 = vmul.f32 %v1535, %v1549
    %v1552 = vmul.f32 %v1536, %v1550
    %v1553 = vlaneseq
    %v1554 = vshrl.u32 %v1553, 7
    %v1555 = vsub.s32 0, %v1554
    %v1556 = vrot.slane %v1295, %v1555
    %v1557 = vmul.f32 %v1551, %v1556
    %v1558 = vmul.f32 %v1552, %v1556
    %v1559 = vlaneseq
    %v1560 = vshrl.u32 %v1559, 7
    %v1561 = vsub.s32 0, %v1560
    %v1562 = vrot.slane %v1296, %v1561
    %v1563 = vadd.f32 %v1557, %v1562
    %v1564 = vadd.f32 %v1558, %v1562
    %1566 = vset.pattern.permute.xlu0 16
    %1567 = vperm.xlu0 %1566, %v61
    %v1568 = vpop.permute.xlu0 %1567
    %1571 = vset.pattern.permute.xlu0 16
    %1572 = vperm.xlu0 %1571, %v62
    %v1573 = vpop.permute.xlu0 %1572
    %v1575 = vmul.f32 %v1563, %v1568
    %v1576 = vmul.f32 %v1564, %v1573
    %1577 = vst.msk [vmem:[#allocation8] sm:$0xff] %vm72, %v1575
    %1578 = vst.msk [vmem:[#allocation8 + $0x8] sm:$0xff] %vm72, %v1576
    // Predicated region
    $region30: #{tpu_custom_call.1} parent=1 // pred_check
      _
    $region31: #{tpu_custom_call.1} parent=1 // pred_check_branch
      %1580 = sbr.rel (0) target = $region33
    $region32: #{tpu_custom_call.1} parent=1 // pred_region
      %s1582 = ssub.s32 256, 256
      %1583 = vsyncadd [#allocation4], %s1582
      %s1584 = sshll.u32 [#allocation8], 4
      %s1585 = int_to_ptr.vmem [resolvable:$true] %s1584
      %1590 = dma.vmem_to_hbm [thread:$0]  %s1585, 256, %s4, [#allocation4], 128, 128, 8
    $region33: #{tpu_custom_call.1} parent=1 // pred_fallthru
      _
    // Predicated region
    $region34: #{tpu_custom_call.1} parent=1 // pred_check
      _
    $region35: #{tpu_custom_call.1} parent=1 // pred_check_branch
      %1592 = sbr.rel (0) target = $region37
    $region36: #{tpu_custom_call.1} parent=1 // pred_region
      %1593 = dma.done [#allocation4], 256
    $region37: #{tpu_custom_call.1} parent=1 // pred_fallthru
      _
    %1594 = vsyncpa [#allocation3], 1
    %1595 = vsyncpa [#allocation6], 1
    %1596 = vsyncpa [#allocation4], 1

</llo_original>
